<compile_context>
chip_gen: v7x
topology: tpu7x:2x2x1
jax: 0.10.0
libtpu: 0.0.40
codegen_flags: <defaults>
</compile_context>

<pallas_src>
import jax
import jax.numpy as jnp
from jax.experimental import pallas as pl
from jax.experimental.pallas import tpu as pltpu


# ------------------------------ tiling helpers ----------------------------- #
def _pick_row_block(H, W, F_l, F_g, F_int, Hs, Ws, budget_bytes, max_unroll):
    """Largest row-block Hb (divisor of H, <= max_unroll) whose double-buffered
    working set fits the VMEM budget; keeps Hb*W a multiple of 128 unless the
    block is the full plane."""
    Ps = Hs * Ws

    def work_bytes(Hb):
        return 4 * (2 * 2 * F_l * Hb * W           # x-in + out blocks, double-buffered
                    + 2 * F_g * Ps                 # g small plane, double-buffered
                    + F_int * Ps                   # g1s scratch
                    + Hs * F_int * max(W, 128)     # col-interp scratch (lane padded)
                    + F_int * Hb * W               # g1 row-block scratch
                    + F_int * (F_g + F_l + 3))     # resident weights

    for Hb in range(min(H, max_unroll), 0, -1):
        if H % Hb:
            continue
        if (Hb * W) % 128 != 0 and Hb != H:
            continue
        if work_bytes(Hb) <= budget_bytes:
            return Hb, work_bytes(Hb)
    return H, work_bytes(H)


def _vmem_limit(work_bytes):
    """Scoped-VMEM limit: never below the working set (+ slack), floored at the
    32 MiB default (the row-block chooser keeps the working set bounded)."""
    return int(max(work_bytes + (8 << 20), 32 << 20))


def _interp_coeffs(n_in, n_out):
    """align_corners=True bilinear sampling coefficients along one axis."""
    src = jnp.arange(n_out, dtype=jnp.float32) * (n_in - 1) / max(n_out - 1, 1)
    lo = jnp.clip(jnp.floor(src).astype(jnp.int32), 0, n_in - 1)
    hi = jnp.clip(lo + 1, 0, n_in - 1)
    frac = src - lo.astype(jnp.float32)
    return lo, hi, frac


def _col_interp_matrix(Ws, W):
    """(Ws, W) matrix M such that upsampled_row = small_row @ M (align_corners)."""
    lo, hi, frac = _interp_coeffs(Ws, W)
    m_lo = jax.nn.one_hot(lo, Ws, dtype=jnp.float32)      # (W, Ws)
    m_hi = jax.nn.one_hot(hi, Ws, dtype=jnp.float32)
    return (m_lo * (1.0 - frac)[:, None] + m_hi * frac[:, None]).T


# ------------------------------ fused kernel ------------------------------- #
def _make_kernel(Hs, Ws, W, Hb):
    def kernel(g_ref, x_ref, cmat_ref, rlo_ref, rhi_ref, rfrac_ref,
               wg_ref, bg_ref, wx_ref, bx_ref, wpsi_ref, bpsi_ref,
               o_ref, g1s_ref, colint_ref, g1b_ref):
        hb = pl.program_id(1)

        # Once per batch element (row-block axis is innermost & "arbitrary"):
        # project the gating signal on the SMALL grid and pre-interpolate its
        # columns into VMEM scratch, reused by every row-block of this batch.
        @pl.when(hb == 0)
        def _():
            g1s_ref[...] = (jnp.dot(wg_ref[...], g_ref[...],
                                    preferred_element_type=jnp.float32)
                            + bg_ref[...])
            for hs in range(Hs):                       # static unroll, Hs small
                colint_ref[hs] = jnp.dot(g1s_ref[:, hs * Ws:(hs + 1) * Ws],
                                         cmat_ref[...],
                                         preferred_element_type=jnp.float32)

        # x projection for this row-block (lane-dense (F_l, Hb*W) layout).
        x = x_ref[...]
        x1 = (jnp.dot(wx_ref[...], x, preferred_element_type=jnp.float32)
              + bx_ref[...])

        # Row interpolation of the (already column-interpolated) g branch.
        for ho in range(Hb):                           # static unroll
            hog = hb * Hb + ho                         # global output row
            lo = rlo_ref[hog]
            hi = rhi_ref[hog]
            w = rfrac_ref[hog]
            top = colint_ref[lo]                       # (F_int, W)
            bot = colint_ref[hi]
            g1b_ref[:, ho * W:(ho + 1) * W] = top + w * (bot - top)

        a = jnp.maximum(g1b_ref[...] + x1, 0.0)                        # ReLU
        # psi: VPU multiply + cross-sublane reduce (skips the degenerate M=1
        # MXU matmul); sigmoid runs on the EUP slot.
        p = jax.nn.sigmoid(jnp.sum(a * wpsi_ref[...], axis=0, keepdims=True)
                           + bpsi_ref[0])                              # (1, Hb*W)
        o_ref[...] = (x.astype(jnp.float32) * p).astype(o_ref.dtype)

    return kernel


# ----------------------------- pallas_call wrapper -------------------------- #
def attention_gate_fused(g, x, params, *, vmem_budget_bytes=24 << 20,
                         max_unroll_rows=64):
    """Fused attention gate: g (N,F_g,H/2,W/2), x (N,F_l,H,W) -> (N,F_l,H,W)."""
    N, F_l, H, W = x.shape
    Ng, F_g, Hs, Ws = g.shape
    assert Ng == N and H == 2 * Hs and W == 2 * Ws
    F_int = params["wg"].shape[0]
    Ps = Hs * Ws

    Hb, work = _pick_row_block(H, W, F_l, F_g, F_int, Hs, Ws,
                               vmem_budget_bytes, max_unroll_rows)
    n_hb = H // Hb

    g_flat = g.reshape(N, F_g, Ps)           # free reshapes, no HBM movement
    x_flat = x.reshape(N, F_l, H * W)

    cmat = _col_interp_matrix(Ws, W)                         # (Ws, W)
    rlo, rhi, rfrac = _interp_coeffs(Hs, H)                  # (H,) each
    wpsi_col = params["wpsi"].reshape(F_int, 1)
    bpsi = params["bpsi"].reshape(1)

    kernel = _make_kernel(Hs, Ws, W, Hb)
    smem = pl.BlockSpec(memory_space=pltpu.MemorySpace.SMEM)

    flops = int(2 * N * H * W * F_int * (F_l + 1)      # wx + psi
                + 2 * N * F_int * F_g * Ps             # g projection
                + 2 * N * F_int * Ps * W               # column interp
                + 4 * N * F_int * H * W)               # row lerp
    bytes_accessed = int(4 * (2 * x_flat.size + g_flat.size
                              + cmat.size + 3 * H + 1
                              + params["wg"].size + params["wx"].size
                              + 3 * F_int + 1))

    out = pl.pallas_call(
        kernel,
        out_shape=jax.ShapeDtypeStruct((N, F_l, H * W), x.dtype),
        grid_spec=pltpu.PrefetchScalarGridSpec(
            num_scalar_prefetch=0,
            grid=(N, n_hb),
            in_specs=[
                pl.BlockSpec((None, F_g, Ps), lambda n, t: (n, 0, 0)),
                pl.BlockSpec((None, F_l, Hb * W), lambda n, t: (n, 0, t)),
                pl.BlockSpec((Ws, W), lambda n, t: (0, 0)),
                smem, smem, smem,                       # rlo, rhi, rfrac
                pl.BlockSpec((F_int, F_g), lambda n, t: (0, 0)),
                pl.BlockSpec((F_int, 1), lambda n, t: (0, 0)),
                pl.BlockSpec((F_int, F_l), lambda n, t: (0, 0)),
                pl.BlockSpec((F_int, 1), lambda n, t: (0, 0)),
                pl.BlockSpec((F_int, 1), lambda n, t: (0, 0)),
                smem,                                   # bpsi
            ],
            out_specs=pl.BlockSpec((None, F_l, Hb * W), lambda n, t: (n, 0, t)),
            scratch_shapes=[
                pltpu.VMEM((F_int, Ps), jnp.float32),        # g1s (small grid)
                pltpu.VMEM((Hs, F_int, W), jnp.float32),     # col-interp rows
                pltpu.VMEM((F_int, Hb * W), jnp.float32),    # g1 row block
            ],
        ),
        compiler_params=pltpu.CompilerParams(
            dimension_semantics=("parallel", "arbitrary"),
            vmem_limit_bytes=_vmem_limit(work)),
        cost_estimate=pl.CostEstimate(flops=flops,
                                      transcendentals=int(N * H * W),
                                      bytes_accessed=bytes_accessed),
    )(g_flat, x_flat, cmat, rlo, rhi, rfrac,
      params["wg"], params["bg"], params["wx"], params["bx"],
      wpsi_col, bpsi)
    return out.reshape(N, F_l, H, W)


def attention_block_forward(g, x, params):
    return attention_gate_fused(g, x, params)


# ------------------------------- JAX reference ------------------------------ #
def upsample2x_bilinear_align_corners(a):
    """NCHW bilinear 2x upsample, align_corners=True (matches nn.Upsample)."""
    N, C, H, W = a.shape
    Ho, Wo = 2 * H, 2 * W

    def coords(n_in, n_out):
        if n_out == 1 or n_in == 1:
            src = jnp.zeros((n_out,), jnp.float32)
        else:
            src = jnp.arange(n_out, dtype=jnp.float32) * (n_in - 1) / (n_out - 1)
        i0 = jnp.clip(jnp.floor(src).astype(jnp.int32), 0, n_in - 1)
        i1 = jnp.clip(i0 + 1, 0, n_in - 1)
        w = src - i0.astype(jnp.float32)
        return i0, i1, w

    r0, r1, rw = coords(H, Ho)
    c0, c1, cw = coords(W, Wo)
    rows = (a[:, :, r0, :] * (1.0 - rw)[None, None, :, None]
            + a[:, :, r1, :] * rw[None, None, :, None])
    out = (rows[:, :, :, c0] * (1.0 - cw)[None, None, None, :]
           + rows[:, :, :, c1] * cw[None, None, None, :])
    return out


def fold_conv_bn(w, b, gamma, beta, mean, var, eps=1e-5):
    """Fold Conv1x1(bias) + BatchNorm(inference) into (w_folded, b_folded)."""
    s = gamma / jnp.sqrt(var + eps)
    return w * s[:, None], (b - mean) * s + beta


def attention_block_reference(g, x, params):
    """Pure-JAX reference in the ORIGINAL op order (upsample -> conv)."""
    g_up = upsample2x_bilinear_align_corners(g)
    g1 = jnp.einsum("oc,nchw->nohw", params["wg"], g_up) \
        + params["bg"].reshape(1, -1, 1, 1)
    x1 = jnp.einsum("oc,nchw->nohw", params["wx"], x) \
        + params["bx"].reshape(1, -1, 1, 1)
    a = jnp.maximum(g1 + x1, 0.0)
    p = jax.nn.sigmoid(jnp.einsum("oc,nchw->nohw", params["wpsi"], a)
                       + params["bpsi"].reshape(1, -1, 1, 1))
    return x * p


# --------------------------------- main ------------------------------------ #
if __name__ == "__main__":
    key = jax.random.PRNGKey(0)
    N, F_g, F_l, F_int = 2, 4, 4, 8
    Hg, Wg = 8, 8          # gating-signal spatial size
    H, W = 2 * Hg, 2 * Wg  # skip-connection spatial size (after 2x upsample)

    ks = jax.random.split(key, 16)
    g = jax.random.normal(ks[0], (N, F_g, Hg, Wg), jnp.float32)
    x = jax.random.normal(ks[1], (N, F_l, H, W), jnp.float32)

    def bn_params(k, c):
        k1, k2, k3, k4 = jax.random.split(k, 4)
        gamma = 1.0 + 0.1 * jax.random.normal(k1, (c,), jnp.float32)
        beta = 0.1 * jax.random.normal(k2, (c,), jnp.float32)
        mean = 0.1 * jax.random.normal(k3, (c,), jnp.float32)
        var = jnp.abs(1.0 + 0.1 * jax.random.normal(k4, (c,), jnp.float32))
        return gamma, beta, mean, var

    wg_raw = 0.2 * jax.random.normal(ks[2], (F_int, F_g), jnp.float32)
    bg_raw = 0.1 * jax.random.normal(ks[3], (F_int,), jnp.float32)
    wx_raw = 0.2 * jax.random.normal(ks[4], (F_int, F_l), jnp.float32)
    bx_raw = 0.1 * jax.random.normal(ks[5], (F_int,), jnp.float32)
    wpsi_raw = 0.2 * jax.random.normal(ks[6], (1, F_int), jnp.float32)
    bpsi_raw = 0.1 * jax.random.normal(ks[7], (1,), jnp.float32)

    wg_f, bg_f = fold_conv_bn(wg_raw, bg_raw, *bn_params(ks[8], F_int))
    wx_f, bx_f = fold_conv_bn(wx_raw, bx_raw, *bn_params(ks[9], F_int))
    wpsi_f, bpsi_f = fold_conv_bn(wpsi_raw, bpsi_raw, *bn_params(ks[10], 1))

    params = {
        "wg": wg_f, "bg": bg_f.reshape(F_int, 1),
        "wx": wx_f, "bx": bx_f.reshape(F_int, 1),
        "wpsi": wpsi_f, "bpsi": bpsi_f.reshape(1),
    }

    out = attention_block_forward(g, x, params)
    out = jax.block_until_ready(out)

    ref = attention_block_reference(g, x, params)
    assert out.shape == (N, F_l, H, W)
    assert jnp.allclose(out, ref, atol=1e-4, rtol=1e-4)

    print("KERNEL_OK")
</pallas_src>

<mosaic_0001>
module attributes {stable_mosaic.version = 11 : i64} {
  func.func @kernel(%arg0: i32, %arg1: i32, %arg2: memref<1x4x64xf32, #tpu.memory_space<vmem>>, %arg3: memref<1x4x256xf32, #tpu.memory_space<vmem>>, %arg4: memref<8x16xf32, #tpu.memory_space<vmem>>, %arg5: memref<16xi32, #tpu.memory_space<smem>>, %arg6: memref<16xi32, #tpu.memory_space<smem>>, %arg7: memref<16xf32, #tpu.memory_space<smem>>, %arg8: memref<8x4xf32, #tpu.memory_space<vmem>>, %arg9: memref<8x1xf32, #tpu.memory_space<vmem>>, %arg10: memref<8x4xf32, #tpu.memory_space<vmem>>, %arg11: memref<8x1xf32, #tpu.memory_space<vmem>>, %arg12: memref<8x1xf32, #tpu.memory_space<vmem>>, %arg13: memref<1xf32, #tpu.memory_space<smem>>, %arg14: memref<1x4x256xf32, #tpu.memory_space<vmem>>, %arg15: memref<8x64xf32, #tpu.memory_space<vmem>>, %arg16: memref<8x8x16xf32, #tpu.memory_space<vmem>>, %arg17: memref<8x256xf32, #tpu.memory_space<vmem>>) attributes {dimension_semantics = [#tpu.dimension_semantics<parallel>, #tpu.dimension_semantics<arbitrary>], iteration_bounds = array<i64: 2, 1>, scalar_prefetch = 0 : i64, scratch_operands = 3 : i64, tpu.core_type = #tpu.core_type<tc>, window_params = [{transform_indices = @transform_0, window_bounds = array<i64: 1, 4, 64>}, {transform_indices = @transform_1, window_bounds = array<i64: 1, 4, 256>}, {pipeline_mode = #tpu.pipeline_mode<synchronous>, transform_indices = @transform_2, window_bounds = array<i64: 8, 16>}, {transform_indices = @transform_3, window_bounds = array<i64: 16>}, {transform_indices = @transform_4, window_bounds = array<i64: 16>}, {transform_indices = @transform_5, window_bounds = array<i64: 16>}, {pipeline_mode = #tpu.pipeline_mode<synchronous>, transform_indices = @transform_6, window_bounds = array<i64: 8, 4>}, {pipeline_mode = #tpu.pipeline_mode<synchronous>, transform_indices = @transform_7, window_bounds = array<i64: 8, 1>}, {pipeline_mode = #tpu.pipeline_mode<synchronous>, transform_indices = @transform_8, window_bounds = array<i64: 8, 4>}, {pipeline_mode = #tpu.pipeline_mode<synchronous>, transform_indices = @transform_9, window_bounds = array<i64: 8, 1>}, {pipeline_mode = #tpu.pipeline_mode<synchronous>, transform_indices = @transform_10, window_bounds = array<i64: 8, 1>}, {transform_indices = @transform_11, window_bounds = array<i64: 1>}, {transform_indices = @transform_12, window_bounds = array<i64: 1, 4, 256>}]} {
    %c0_i32 = arith.constant 0 : i32
    %0 = arith.cmpi eq, %arg1, %c0_i32 : i32
    %1 = arith.extui %0 : i1 to i32
    %c0_i32_0 = arith.constant 0 : i32
    %2 = arith.cmpi ne, %1, %c0_i32_0 : i32
    scf.if %2 {
      %c0_115 = arith.constant 0 : index
      %c0_116 = arith.constant 0 : index
      %336 = vector.load %arg8[%c0_115, %c0_116] : memref<8x4xf32, #tpu.memory_space<vmem>>, vector<8x4xf32>
      %c0_117 = arith.constant 0 : index
      %c0_118 = arith.constant 0 : index
      %c0_119 = arith.constant 0 : index
      %337 = vector.load %arg2[%c0_117, %c0_118, %c0_119] : memref<1x4x64xf32, #tpu.memory_space<vmem>>, vector<1x4x64xf32>
      %338 = vector.shape_cast %337 : vector<1x4x64xf32> to vector<4x64xf32>
      %cst_120 = arith.constant dense<0.000000e+00> : vector<8x64xf32>
      %339 = tpu.matmul %336, %338, %cst_120 {dimension_numbers = #tpu.dot_dimension_numbers<[1], [0], [0], [1], [0, 0, 1, 1], [], []>} : vector<8x4xf32>, vector<4x64xf32>, vector<8x64xf32> -> vector<8x64xf32>
      %c0_121 = arith.constant 0 : index
      %c0_122 = arith.constant 0 : index
      %340 = vector.load %arg9[%c0_121, %c0_122] : memref<8x1xf32, #tpu.memory_space<vmem>>, vector<8x1xf32>
      %341 = vector.broadcast %340 : vector<8x1xf32> to vector<8x64xf32>
      %342 = arith.addf %339, %341 : vector<8x64xf32>
      %c0_123 = arith.constant 0 : index
      %c0_124 = arith.constant 0 : index
      %343 = vector.load %arg15[%c0_123, %c0_124] : memref<8x64xf32, #tpu.memory_space<vmem>>, vector<8x64xf32>
      tpu.vector_store %arg15[%c0_123, %c0_124], %342 {strides = array<i32>} : memref<8x64xf32, #tpu.memory_space<vmem>>, vector<8x64xf32>,
      %c0_125 = arith.constant 0 : index
      %c0_126 = arith.constant 0 : index
      %344 = vector.load %arg15[%c0_125, %c0_126] : memref<8x64xf32, #tpu.memory_space<vmem>>, vector<8x8xf32>
      %c0_127 = arith.constant 0 : index
      %c0_128 = arith.constant 0 : index
      %345 = vector.load %arg4[%c0_127, %c0_128] : memref<8x16xf32, #tpu.memory_space<vmem>>, vector<8x16xf32>
      %cst_129 = arith.constant dense<0.000000e+00> : vector<8x16xf32>
      %346 = tpu.matmul %344, %345, %cst_129 {dimension_numbers = #tpu.dot_dimension_numbers<[1], [0], [0], [1], [0, 0, 1, 1], [], []>} : vector<8x8xf32>, vector<8x16xf32>, vector<8x16xf32> -> vector<8x16xf32>
      %c0_130 = arith.constant 0 : index
      %c0_131 = arith.constant 0 : index
      %c0_132 = arith.constant 0 : index
      %347 = vector.load %arg16[%c0_130, %c0_131, %c0_132] : memref<8x8x16xf32, #tpu.memory_space<vmem>>, vector<1x8x16xf32>
      %348 = vector.shape_cast %347 : vector<1x8x16xf32> to vector<8x16xf32>
      %349 = vector.shape_cast %346 : vector<8x16xf32> to vector<1x8x16xf32>
      tpu.vector_store %arg16[%c0_130, %c0_131, %c0_132], %349 {strides = array<i32>} : memref<8x8x16xf32, #tpu.memory_space<vmem>>, vector<1x8x16xf32>,
      %c0_133 = arith.constant 0 : index
      %c8 = arith.constant 8 : index
      %350 = vector.load %arg15[%c0_133, %c8] : memref<8x64xf32, #tpu.memory_space<vmem>>, vector<8x8xf32>
      %c0_134 = arith.constant 0 : index
      %c0_135 = arith.constant 0 : index
      %351 = vector.load %arg4[%c0_134, %c0_135] : memref<8x16xf32, #tpu.memory_space<vmem>>, vector<8x16xf32>
      %cst_136 = arith.constant dense<0.000000e+00> : vector<8x16xf32>
      %352 = tpu.matmul %350, %351, %cst_136 {dimension_numbers = #tpu.dot_dimension_numbers<[1], [0], [0], [1], [0, 0, 1, 1], [], []>} : vector<8x8xf32>, vector<8x16xf32>, vector<8x16xf32> -> vector<8x16xf32>
      %c1 = arith.constant 1 : index
      %c0_137 = arith.constant 0 : index
      %c0_138 = arith.constant 0 : index
      %353 = vector.load %arg16[%c1, %c0_137, %c0_138] : memref<8x8x16xf32, #tpu.memory_space<vmem>>, vector<1x8x16xf32>
      %354 = vector.shape_cast %353 : vector<1x8x16xf32> to vector<8x16xf32>
      %355 = vector.shape_cast %352 : vector<8x16xf32> to vector<1x8x16xf32>
      tpu.vector_store %arg16[%c1, %c0_137, %c0_138], %355 {strides = array<i32>} : memref<8x8x16xf32, #tpu.memory_space<vmem>>, vector<1x8x16xf32>,
      %c0_139 = arith.constant 0 : index
      %c16_140 = arith.constant 16 : index
      %356 = vector.load %arg15[%c0_139, %c16_140] : memref<8x64xf32, #tpu.memory_space<vmem>>, vector<8x8xf32>
      %c0_141 = arith.constant 0 : index
      %c0_142 = arith.constant 0 : index
      %357 = vector.load %arg4[%c0_141, %c0_142] : memref<8x16xf32, #tpu.memory_space<vmem>>, vector<8x16xf32>
      %cst_143 = arith.constant dense<0.000000e+00> : vector<8x16xf32>
      %358 = tpu.matmul %356, %357, %cst_143 {dimension_numbers = #tpu.dot_dimension_numbers<[1], [0], [0], [1], [0, 0, 1, 1], [], []>} : vector<8x8xf32>, vector<8x16xf32>, vector<8x16xf32> -> vector<8x16xf32>
      %c2 = arith.constant 2 : index
      %c0_144 = arith.constant 0 : index
      %c0_145 = arith.constant 0 : index
      %359 = vector.load %arg16[%c2, %c0_144, %c0_145] : memref<8x8x16xf32, #tpu.memory_space<vmem>>, vector<1x8x16xf32>
      %360 = vector.shape_cast %359 : vector<1x8x16xf32> to vector<8x16xf32>
      %361 = vector.shape_cast %358 : vector<8x16xf32> to vector<1x8x16xf32>
      tpu.vector_store %arg16[%c2, %c0_144, %c0_145], %361 {strides = array<i32>} : memref<8x8x16xf32, #tpu.memory_space<vmem>>, vector<1x8x16xf32>,
      %c0_146 = arith.constant 0 : index
      %c24 = arith.constant 24 : index
      %362 = vector.load %arg15[%c0_146, %c24] : memref<8x64xf32, #tpu.memory_space<vmem>>, vector<8x8xf32>
      %c0_147 = arith.constant 0 : index
      %c0_148 = arith.constant 0 : index
      %363 = vector.load %arg4[%c0_147, %c0_148] : memref<8x16xf32, #tpu.memory_space<vmem>>, vector<8x16xf32>
      %cst_149 = arith.constant dense<0.000000e+00> : vector<8x16xf32>
      %364 = tpu.matmul %362, %363, %cst_149 {dimension_numbers = #tpu.dot_dimension_numbers<[1], [0], [0], [1], [0, 0, 1, 1], [], []>} : vector<8x8xf32>, vector<8x16xf32>, vector<8x16xf32> -> vector<8x16xf32>
      %c3 = arith.constant 3 : index
      %c0_150 = arith.constant 0 : index
      %c0_151 = arith.constant 0 : index
      %365 = vector.load %arg16[%c3, %c0_150, %c0_151] : memref<8x8x16xf32, #tpu.memory_space<vmem>>, vector<1x8x16xf32>
      %366 = vector.shape_cast %365 : vector<1x8x16xf32> to vector<8x16xf32>
      %367 = vector.shape_cast %364 : vector<8x16xf32> to vector<1x8x16xf32>
      tpu.vector_store %arg16[%c3, %c0_150, %c0_151], %367 {strides = array<i32>} : memref<8x8x16xf32, #tpu.memory_space<vmem>>, vector<1x8x16xf32>,
      %c0_152 = arith.constant 0 : index
      %c32_153 = arith.constant 32 : index
      %368 = vector.load %arg15[%c0_152, %c32_153] : memref<8x64xf32, #tpu.memory_space<vmem>>, vector<8x8xf32>
      %c0_154 = arith.constant 0 : index
      %c0_155 = arith.constant 0 : index
      %369 = vector.load %arg4[%c0_154, %c0_155] : memref<8x16xf32, #tpu.memory_space<vmem>>, vector<8x16xf32>
      %cst_156 = arith.constant dense<0.000000e+00> : vector<8x16xf32>
      %370 = tpu.matmul %368, %369, %cst_156 {dimension_numbers = #tpu.dot_dimension_numbers<[1], [0], [0], [1], [0, 0, 1, 1], [], []>} : vector<8x8xf32>, vector<8x16xf32>, vector<8x16xf32> -> vector<8x16xf32>
      %c4 = arith.constant 4 : index
      %c0_157 = arith.constant 0 : index
      %c0_158 = arith.constant 0 : index
      %371 = vector.load %arg16[%c4, %c0_157, %c0_158] : memref<8x8x16xf32, #tpu.memory_space<vmem>>, vector<1x8x16xf32>
      %372 = vector.shape_cast %371 : vector<1x8x16xf32> to vector<8x16xf32>
      %373 = vector.shape_cast %370 : vector<8x16xf32> to vector<1x8x16xf32>
      tpu.vector_store %arg16[%c4, %c0_157, %c0_158], %373 {strides = array<i32>} : memref<8x8x16xf32, #tpu.memory_space<vmem>>, vector<1x8x16xf32>,
      %c0_159 = arith.constant 0 : index
      %c40 = arith.constant 40 : index
      %374 = vector.load %arg15[%c0_159, %c40] : memref<8x64xf32, #tpu.memory_space<vmem>>, vector<8x8xf32>
      %c0_160 = arith.constant 0 : index
      %c0_161 = arith.constant 0 : index
      %375 = vector.load %arg4[%c0_160, %c0_161] : memref<8x16xf32, #tpu.memory_space<vmem>>, vector<8x16xf32>
      %cst_162 = arith.constant dense<0.000000e+00> : vector<8x16xf32>
      %376 = tpu.matmul %374, %375, %cst_162 {dimension_numbers = #tpu.dot_dimension_numbers<[1], [0], [0], [1], [0, 0, 1, 1], [], []>} : vector<8x8xf32>, vector<8x16xf32>, vector<8x16xf32> -> vector<8x16xf32>
      %c5 = arith.constant 5 : index
      %c0_163 = arith.constant 0 : index
      %c0_164 = arith.constant 0 : index
      %377 = vector.load %arg16[%c5, %c0_163, %c0_164] : memref<8x8x16xf32, #tpu.memory_space<vmem>>, vector<1x8x16xf32>
      %378 = vector.shape_cast %377 : vector<1x8x16xf32> to vector<8x16xf32>
      %379 = vector.shape_cast %376 : vector<8x16xf32> to vector<1x8x16xf32>
      tpu.vector_store %arg16[%c5, %c0_163, %c0_164], %379 {strides = array<i32>} : memref<8x8x16xf32, #tpu.memory_space<vmem>>, vector<1x8x16xf32>,
      %c0_165 = arith.constant 0 : index
      %c48_166 = arith.constant 48 : index
      %380 = vector.load %arg15[%c0_165, %c48_166] : memref<8x64xf32, #tpu.memory_space<vmem>>, vector<8x8xf32>
      %c0_167 = arith.constant 0 : index
      %c0_168 = arith.constant 0 : index
      %381 = vector.load %arg4[%c0_167, %c0_168] : memref<8x16xf32, #tpu.memory_space<vmem>>, vector<8x16xf32>
      %cst_169 = arith.constant dense<0.000000e+00> : vector<8x16xf32>
      %382 = tpu.matmul %380, %381, %cst_169 {dimension_numbers = #tpu.dot_dimension_numbers<[1], [0], [0], [1], [0, 0, 1, 1], [], []>} : vector<8x8xf32>, vector<8x16xf32>, vector<8x16xf32> -> vector<8x16xf32>
      %c6 = arith.constant 6 : index
      %c0_170 = arith.constant 0 : index
      %c0_171 = arith.constant 0 : index
      %383 = vector.load %arg16[%c6, %c0_170, %c0_171] : memref<8x8x16xf32, #tpu.memory_space<vmem>>, vector<1x8x16xf32>
      %384 = vector.shape_cast %383 : vector<1x8x16xf32> to vector<8x16xf32>
      %385 = vector.shape_cast %382 : vector<8x16xf32> to vector<1x8x16xf32>
      tpu.vector_store %arg16[%c6, %c0_170, %c0_171], %385 {strides = array<i32>} : memref<8x8x16xf32, #tpu.memory_space<vmem>>, vector<1x8x16xf32>,
      %c0_172 = arith.constant 0 : index
      %c56 = arith.constant 56 : index
      %386 = vector.load %arg15[%c0_172, %c56] : memref<8x64xf32, #tpu.memory_space<vmem>>, vector<8x8xf32>
      %c0_173 = arith.constant 0 : index
      %c0_174 = arith.constant 0 : index
      %387 = vector.load %arg4[%c0_173, %c0_174] : memref<8x16xf32, #tpu.memory_space<vmem>>, vector<8x16xf32>
      %cst_175 = arith.constant dense<0.000000e+00> : vector<8x16xf32>
      %388 = tpu.matmul %386, %387, %cst_175 {dimension_numbers = #tpu.dot_dimension_numbers<[1], [0], [0], [1], [0, 0, 1, 1], [], []>} : vector<8x8xf32>, vector<8x16xf32>, vector<8x16xf32> -> vector<8x16xf32>
      %c7 = arith.constant 7 : index
      %c0_176 = arith.constant 0 : index
      %c0_177 = arith.constant 0 : index
      %389 = vector.load %arg16[%c7, %c0_176, %c0_177] : memref<8x8x16xf32, #tpu.memory_space<vmem>>, vector<1x8x16xf32>
      %390 = vector.shape_cast %389 : vector<1x8x16xf32> to vector<8x16xf32>
      %391 = vector.shape_cast %388 : vector<8x16xf32> to vector<1x8x16xf32>
      tpu.vector_store %arg16[%c7, %c0_176, %c0_177], %391 {strides = array<i32>} : memref<8x8x16xf32, #tpu.memory_space<vmem>>, vector<1x8x16xf32>,
    } else {
    }
    %c0 = arith.constant 0 : index
    %c0_1 = arith.constant 0 : index
    %c0_2 = arith.constant 0 : index
    %3 = vector.load %arg3[%c0, %c0_1, %c0_2] : memref<1x4x256xf32, #tpu.memory_space<vmem>>, vector<1x4x256xf32>
    %4 = vector.shape_cast %3 : vector<1x4x256xf32> to vector<4x256xf32>
    %c0_3 = arith.constant 0 : index
    %c0_4 = arith.constant 0 : index
    %5 = vector.load %arg10[%c0_3, %c0_4] : memref<8x4xf32, #tpu.memory_space<vmem>>, vector<8x4xf32>
    %cst = arith.constant dense<0.000000e+00> : vector<8x256xf32>
    %6 = tpu.matmul %5, %4, %cst {dimension_numbers = #tpu.dot_dimension_numbers<[1], [0], [0], [1], [0, 0, 1, 1], [], []>} : vector<8x4xf32>, vector<4x256xf32>, vector<8x256xf32> -> vector<8x256xf32>
    %c0_5 = arith.constant 0 : index
    %c0_6 = arith.constant 0 : index
    %7 = vector.load %arg11[%c0_5, %c0_6] : memref<8x1xf32, #tpu.memory_space<vmem>>, vector<8x1xf32>
    %8 = vector.broadcast %7 : vector<8x1xf32> to vector<8x256xf32>
    %9 = arith.addf %6, %8 : vector<8x256xf32>
    %c16_i32 = arith.constant 16 : i32
    %10 = arith.muli %arg1, %c16_i32 : i32
    %c0_i32_7 = arith.constant 0 : i32
    %11 = arith.addi %10, %c0_i32_7 : i32
    %12 = arith.index_cast %11 : i32 to index
    %13 = memref.load %arg5[%12] : memref<16xi32, #tpu.memory_space<smem>>
    %14 = arith.index_cast %11 : i32 to index
    %15 = memref.load %arg6[%14] : memref<16xi32, #tpu.memory_space<smem>>
    %16 = arith.index_cast %11 : i32 to index
    %17 = memref.load %arg7[%16] : memref<16xf32, #tpu.memory_space<smem>>
    %18 = arith.index_cast %13 : i32 to index
    %c0_8 = arith.constant 0 : index
    %c0_9 = arith.constant 0 : index
    %19 = vector.load %arg16[%18, %c0_8, %c0_9] : memref<8x8x16xf32, #tpu.memory_space<vmem>>, vector<1x8x16xf32>
    %20 = vector.shape_cast %19 : vector<1x8x16xf32> to vector<8x16xf32>
    %21 = arith.index_cast %15 : i32 to index
    %c0_10 = arith.constant 0 : index
    %c0_11 = arith.constant 0 : index
    %22 = vector.load %arg16[%21, %c0_10, %c0_11] : memref<8x8x16xf32, #tpu.memory_space<vmem>>, vector<1x8x16xf32>
    %23 = vector.shape_cast %22 : vector<1x8x16xf32> to vector<8x16xf32>
    %24 = arith.subf %23, %20 : vector<8x16xf32>
    %25 = vector.broadcast %17 : f32 to vector<8x16xf32>
    %26 = arith.mulf %25, %24 : vector<8x16xf32>
    %27 = arith.addf %20, %26 : vector<8x16xf32>
    %c0_12 = arith.constant 0 : index
    %c0_13 = arith.constant 0 : index
    %28 = vector.load %arg17[%c0_12, %c0_13] : memref<8x256xf32, #tpu.memory_space<vmem>>, vector<8x16xf32>
    tpu.vector_store %arg17[%c0_12, %c0_13], %27 {strides = array<i32>} : memref<8x256xf32, #tpu.memory_space<vmem>>, vector<8x16xf32>,
    %c16_i32_14 = arith.constant 16 : i32
    %29 = arith.muli %arg1, %c16_i32_14 : i32
    %c1_i32 = arith.constant 1 : i32
    %30 = arith.addi %29, %c1_i32 : i32
    %31 = arith.index_cast %30 : i32 to index
    %32 = memref.load %arg5[%31] : memref<16xi32, #tpu.memory_space<smem>>
    %33 = arith.index_cast %30 : i32 to index
    %34 = memref.load %arg6[%33] : memref<16xi32, #tpu.memory_space<smem>>
    %35 = arith.index_cast %30 : i32 to index
    %36 = memref.load %arg7[%35] : memref<16xf32, #tpu.memory_space<smem>>
    %37 = arith.index_cast %32 : i32 to index
    %c0_15 = arith.constant 0 : index
    %c0_16 = arith.constant 0 : index
    %38 = vector.load %arg16[%37, %c0_15, %c0_16] : memref<8x8x16xf32, #tpu.memory_space<vmem>>, vector<1x8x16xf32>
    %39 = vector.shape_cast %38 : vector<1x8x16xf32> to vector<8x16xf32>
    %40 = arith.index_cast %34 : i32 to index
    %c0_17 = arith.constant 0 : index
    %c0_18 = arith.constant 0 : index
    %41 = vector.load %arg16[%40, %c0_17, %c0_18] : memref<8x8x16xf32, #tpu.memory_space<vmem>>, vector<1x8x16xf32>
    %42 = vector.shape_cast %41 : vector<1x8x16xf32> to vector<8x16xf32>
    %43 = arith.subf %42, %39 : vector<8x16xf32>
    %44 = vector.broadcast %36 : f32 to vector<8x16xf32>
    %45 = arith.mulf %44, %43 : vector<8x16xf32>
    %46 = arith.addf %39, %45 : vector<8x16xf32>
    %c0_19 = arith.constant 0 : index
    %c16 = arith.constant 16 : index
    %47 = vector.load %arg17[%c0_19, %c16] : memref<8x256xf32, #tpu.memory_space<vmem>>, vector<8x16xf32>
    tpu.vector_store %arg17[%c0_19, %c16], %46 {strides = array<i32>} : memref<8x256xf32, #tpu.memory_space<vmem>>, vector<8x16xf32>,
    %c16_i32_20 = arith.constant 16 : i32
    %48 = arith.muli %arg1, %c16_i32_20 : i32
    %c2_i32 = arith.constant 2 : i32
    %49 = arith.addi %48, %c2_i32 : i32
    %50 = arith.index_cast %49 : i32 to index
    %51 = memref.load %arg5[%50] : memref<16xi32, #tpu.memory_space<smem>>
    %52 = arith.index_cast %49 : i32 to index
    %53 = memref.load %arg6[%52] : memref<16xi32, #tpu.memory_space<smem>>
    %54 = arith.index_cast %49 : i32 to index
    %55 = memref.load %arg7[%54] : memref<16xf32, #tpu.memory_space<smem>>
    %56 = arith.index_cast %51 : i32 to index
    %c0_21 = arith.constant 0 : index
    %c0_22 = arith.constant 0 : index
    %57 = vector.load %arg16[%56, %c0_21, %c0_22] : memref<8x8x16xf32, #tpu.memory_space<vmem>>, vector<1x8x16xf32>
    %58 = vector.shape_cast %57 : vector<1x8x16xf32> to vector<8x16xf32>
    %59 = arith.index_cast %53 : i32 to index
    %c0_23 = arith.constant 0 : index
    %c0_24 = arith.constant 0 : index
    %60 = vector.load %arg16[%59, %c0_23, %c0_24] : memref<8x8x16xf32, #tpu.memory_space<vmem>>, vector<1x8x16xf32>
    %61 = vector.shape_cast %60 : vector<1x8x16xf32> to vector<8x16xf32>
    %62 = arith.subf %61, %58 : vector<8x16xf32>
    %63 = vector.broadcast %55 : f32 to vector<8x16xf32>
    %64 = arith.mulf %63, %62 : vector<8x16xf32>
    %65 = arith.addf %58, %64 : vector<8x16xf32>
    %c0_25 = arith.constant 0 : index
    %c32 = arith.constant 32 : index
    %66 = vector.load %arg17[%c0_25, %c32] : memref<8x256xf32, #tpu.memory_space<vmem>>, vector<8x16xf32>
    tpu.vector_store %arg17[%c0_25, %c32], %65 {strides = array<i32>} : memref<8x256xf32, #tpu.memory_space<vmem>>, vector<8x16xf32>,
    %c16_i32_26 = arith.constant 16 : i32
    %67 = arith.muli %arg1, %c16_i32_26 : i32
    %c3_i32 = arith.constant 3 : i32
    %68 = arith.addi %67, %c3_i32 : i32
    %69 = arith.index_cast %68 : i32 to index
    %70 = memref.load %arg5[%69] : memref<16xi32, #tpu.memory_space<smem>>
    %71 = arith.index_cast %68 : i32 to index
    %72 = memref.load %arg6[%71] : memref<16xi32, #tpu.memory_space<smem>>
    %73 = arith.index_cast %68 : i32 to index
    %74 = memref.load %arg7[%73] : memref<16xf32, #tpu.memory_space<smem>>
    %75 = arith.index_cast %70 : i32 to index
    %c0_27 = arith.constant 0 : index
    %c0_28 = arith.constant 0 : index
    %76 = vector.load %arg16[%75, %c0_27, %c0_28] : memref<8x8x16xf32, #tpu.memory_space<vmem>>, vector<1x8x16xf32>
    %77 = vector.shape_cast %76 : vector<1x8x16xf32> to vector<8x16xf32>
    %78 = arith.index_cast %72 : i32 to index
    %c0_29 = arith.constant 0 : index
    %c0_30 = arith.constant 0 : index
    %79 = vector.load %arg16[%78, %c0_29, %c0_30] : memref<8x8x16xf32, #tpu.memory_space<vmem>>, vector<1x8x16xf32>
    %80 = vector.shape_cast %79 : vector<1x8x16xf32> to vector<8x16xf32>
    %81 = arith.subf %80, %77 : vector<8x16xf32>
    %82 = vector.broadcast %74 : f32 to vector<8x16xf32>
    %83 = arith.mulf %82, %81 : vector<8x16xf32>
    %84 = arith.addf %77, %83 : vector<8x16xf32>
    %c0_31 = arith.constant 0 : index
    %c48 = arith.constant 48 : index
    %85 = vector.load %arg17[%c0_31, %c48] : memref<8x256xf32, #tpu.memory_space<vmem>>, vector<8x16xf32>
    tpu.vector_store %arg17[%c0_31, %c48], %84 {strides = array<i32>} : memref<8x256xf32, #tpu.memory_space<vmem>>, vector<8x16xf32>,
    %c16_i32_32 = arith.constant 16 : i32
    %86 = arith.muli %arg1, %c16_i32_32 : i32
    %c4_i32 = arith.constant 4 : i32
    %87 = arith.addi %86, %c4_i32 : i32
    %88 = arith.index_cast %87 : i32 to index
    %89 = memref.load %arg5[%88] : memref<16xi32, #tpu.memory_space<smem>>
    %90 = arith.index_cast %87 : i32 to index
    %91 = memref.load %arg6[%90] : memref<16xi32, #tpu.memory_space<smem>>
    %92 = arith.index_cast %87 : i32 to index
    %93 = memref.load %arg7[%92] : memref<16xf32, #tpu.memory_space<smem>>
    %94 = arith.index_cast %89 : i32 to index
    %c0_33 = arith.constant 0 : index
    %c0_34 = arith.constant 0 : index
    %95 = vector.load %arg16[%94, %c0_33, %c0_34] : memref<8x8x16xf32, #tpu.memory_space<vmem>>, vector<1x8x16xf32>
    %96 = vector.shape_cast %95 : vector<1x8x16xf32> to vector<8x16xf32>
    %97 = arith.index_cast %91 : i32 to index
    %c0_35 = arith.constant 0 : index
    %c0_36 = arith.constant 0 : index
    %98 = vector.load %arg16[%97, %c0_35, %c0_36] : memref<8x8x16xf32, #tpu.memory_space<vmem>>, vector<1x8x16xf32>
    %99 = vector.shape_cast %98 : vector<1x8x16xf32> to vector<8x16xf32>
    %100 = arith.subf %99, %96 : vector<8x16xf32>
    %101 = vector.broadcast %93 : f32 to vector<8x16xf32>
    %102 = arith.mulf %101, %100 : vector<8x16xf32>
    %103 = arith.addf %96, %102 : vector<8x16xf32>
    %c0_37 = arith.constant 0 : index
    %c64 = arith.constant 64 : index
    %104 = vector.load %arg17[%c0_37, %c64] : memref<8x256xf32, #tpu.memory_space<vmem>>, vector<8x16xf32>
    tpu.vector_store %arg17[%c0_37, %c64], %103 {strides = array<i32>} : memref<8x256xf32, #tpu.memory_space<vmem>>, vector<8x16xf32>,
    %c16_i32_38 = arith.constant 16 : i32
    %105 = arith.muli %arg1, %c16_i32_38 : i32
    %c5_i32 = arith.constant 5 : i32
    %106 = arith.addi %105, %c5_i32 : i32
    %107 = arith.index_cast %106 : i32 to index
    %108 = memref.load %arg5[%107] : memref<16xi32, #tpu.memory_space<smem>>
    %109 = arith.index_cast %106 : i32 to index
    %110 = memref.load %arg6[%109] : memref<16xi32, #tpu.memory_space<smem>>
    %111 = arith.index_cast %106 : i32 to index
    %112 = memref.load %arg7[%111] : memref<16xf32, #tpu.memory_space<smem>>
    %113 = arith.index_cast %108 : i32 to index
    %c0_39 = arith.constant 0 : index
    %c0_40 = arith.constant 0 : index
    %114 = vector.load %arg16[%113, %c0_39, %c0_40] : memref<8x8x16xf32, #tpu.memory_space<vmem>>, vector<1x8x16xf32>
    %115 = vector.shape_cast %114 : vector<1x8x16xf32> to vector<8x16xf32>
    %116 = arith.index_cast %110 : i32 to index
    %c0_41 = arith.constant 0 : index
    %c0_42 = arith.constant 0 : index
    %117 = vector.load %arg16[%116, %c0_41, %c0_42] : memref<8x8x16xf32, #tpu.memory_space<vmem>>, vector<1x8x16xf32>
    %118 = vector.shape_cast %117 : vector<1x8x16xf32> to vector<8x16xf32>
    %119 = arith.subf %118, %115 : vector<8x16xf32>
    %120 = vector.broadcast %112 : f32 to vector<8x16xf32>
    %121 = arith.mulf %120, %119 : vector<8x16xf32>
    %122 = arith.addf %115, %121 : vector<8x16xf32>
    %c0_43 = arith.constant 0 : index
    %c80 = arith.constant 80 : index
    %123 = vector.load %arg17[%c0_43, %c80] : memref<8x256xf32, #tpu.memory_space<vmem>>, vector<8x16xf32>
    tpu.vector_store %arg17[%c0_43, %c80], %122 {strides = array<i32>} : memref<8x256xf32, #tpu.memory_space<vmem>>, vector<8x16xf32>,
    %c16_i32_44 = arith.constant 16 : i32
    %124 = arith.muli %arg1, %c16_i32_44 : i32
    %c6_i32 = arith.constant 6 : i32
    %125 = arith.addi %124, %c6_i32 : i32
    %126 = arith.index_cast %125 : i32 to index
    %127 = memref.load %arg5[%126] : memref<16xi32, #tpu.memory_space<smem>>
    %128 = arith.index_cast %125 : i32 to index
    %129 = memref.load %arg6[%128] : memref<16xi32, #tpu.memory_space<smem>>
    %130 = arith.index_cast %125 : i32 to index
    %131 = memref.load %arg7[%130] : memref<16xf32, #tpu.memory_space<smem>>
    %132 = arith.index_cast %127 : i32 to index
    %c0_45 = arith.constant 0 : index
    %c0_46 = arith.constant 0 : index
    %133 = vector.load %arg16[%132, %c0_45, %c0_46] : memref<8x8x16xf32, #tpu.memory_space<vmem>>, vector<1x8x16xf32>
    %134 = vector.shape_cast %133 : vector<1x8x16xf32> to vector<8x16xf32>
    %135 = arith.index_cast %129 : i32 to index
    %c0_47 = arith.constant 0 : index
    %c0_48 = arith.constant 0 : index
    %136 = vector.load %arg16[%135, %c0_47, %c0_48] : memref<8x8x16xf32, #tpu.memory_space<vmem>>, vector<1x8x16xf32>
    %137 = vector.shape_cast %136 : vector<1x8x16xf32> to vector<8x16xf32>
    %138 = arith.subf %137, %134 : vector<8x16xf32>
    %139 = vector.broadcast %131 : f32 to vector<8x16xf32>
    %140 = arith.mulf %139, %138 : vector<8x16xf32>
    %141 = arith.addf %134, %140 : vector<8x16xf32>
    %c0_49 = arith.constant 0 : index
    %c96 = arith.constant 96 : index
    %142 = vector.load %arg17[%c0_49, %c96] : memref<8x256xf32, #tpu.memory_space<vmem>>, vector<8x16xf32>
    tpu.vector_store %arg17[%c0_49, %c96], %141 {strides = array<i32>} : memref<8x256xf32, #tpu.memory_space<vmem>>, vector<8x16xf32>,
    %c16_i32_50 = arith.constant 16 : i32
    %143 = arith.muli %arg1, %c16_i32_50 : i32
    %c7_i32 = arith.constant 7 : i32
    %144 = arith.addi %143, %c7_i32 : i32
    %145 = arith.index_cast %144 : i32 to index
    %146 = memref.load %arg5[%145] : memref<16xi32, #tpu.memory_space<smem>>
    %147 = arith.index_cast %144 : i32 to index
    %148 = memref.load %arg6[%147] : memref<16xi32, #tpu.memory_space<smem>>
    %149 = arith.index_cast %144 : i32 to index
    %150 = memref.load %arg7[%149] : memref<16xf32, #tpu.memory_space<smem>>
    %151 = arith.index_cast %146 : i32 to index
    %c0_51 = arith.constant 0 : index
    %c0_52 = arith.constant 0 : index
    %152 = vector.load %arg16[%151, %c0_51, %c0_52] : memref<8x8x16xf32, #tpu.memory_space<vmem>>, vector<1x8x16xf32>
    %153 = vector.shape_cast %152 : vector<1x8x16xf32> to vector<8x16xf32>
    %154 = arith.index_cast %148 : i32 to index
    %c0_53 = arith.constant 0 : index
    %c0_54 = arith.constant 0 : index
    %155 = vector.load %arg16[%154, %c0_53, %c0_54] : memref<8x8x16xf32, #tpu.memory_space<vmem>>, vector<1x8x16xf32>
    %156 = vector.shape_cast %155 : vector<1x8x16xf32> to vector<8x16xf32>
    %157 = arith.subf %156, %153 : vector<8x16xf32>
    %158 = vector.broadcast %150 : f32 to vector<8x16xf32>
    %159 = arith.mulf %158, %157 : vector<8x16xf32>
    %160 = arith.addf %153, %159 : vector<8x16xf32>
    %c0_55 = arith.constant 0 : index
    %c112 = arith.constant 112 : index
    %161 = vector.load %arg17[%c0_55, %c112] : memref<8x256xf32, #tpu.memory_space<vmem>>, vector<8x16xf32>
    tpu.vector_store %arg17[%c0_55, %c112], %160 {strides = array<i32>} : memref<8x256xf32, #tpu.memory_space<vmem>>, vector<8x16xf32>,
    %c16_i32_56 = arith.constant 16 : i32
    %162 = arith.muli %arg1, %c16_i32_56 : i32
    %c8_i32 = arith.constant 8 : i32
    %163 = arith.addi %162, %c8_i32 : i32
    %164 = arith.index_cast %163 : i32 to index
    %165 = memref.load %arg5[%164] : memref<16xi32, #tpu.memory_space<smem>>
    %166 = arith.index_cast %163 : i32 to index
    %167 = memref.load %arg6[%166] : memref<16xi32, #tpu.memory_space<smem>>
    %168 = arith.index_cast %163 : i32 to index
    %169 = memref.load %arg7[%168] : memref<16xf32, #tpu.memory_space<smem>>
    %170 = arith.index_cast %165 : i32 to index
    %c0_57 = arith.constant 0 : index
    %c0_58 = arith.constant 0 : index
    %171 = vector.load %arg16[%170, %c0_57, %c0_58] : memref<8x8x16xf32, #tpu.memory_space<vmem>>, vector<1x8x16xf32>
    %172 = vector.shape_cast %171 : vector<1x8x16xf32> to vector<8x16xf32>
    %173 = arith.index_cast %167 : i32 to index
    %c0_59 = arith.constant 0 : index
    %c0_60 = arith.constant 0 : index
    %174 = vector.load %arg16[%173, %c0_59, %c0_60] : memref<8x8x16xf32, #tpu.memory_space<vmem>>, vector<1x8x16xf32>
    %175 = vector.shape_cast %174 : vector<1x8x16xf32> to vector<8x16xf32>
    %176 = arith.subf %175, %172 : vector<8x16xf32>
    %177 = vector.broadcast %169 : f32 to vector<8x16xf32>
    %178 = arith.mulf %177, %176 : vector<8x16xf32>
    %179 = arith.addf %172, %178 : vector<8x16xf32>
    %c0_61 = arith.constant 0 : index
    %c128 = arith.constant 128 : index
    %180 = vector.load %arg17[%c0_61, %c128] : memref<8x256xf32, #tpu.memory_space<vmem>>, vector<8x16xf32>
    tpu.vector_store %arg17[%c0_61, %c128], %179 {strides = array<i32>} : memref<8x256xf32, #tpu.memory_space<vmem>>, vector<8x16xf32>,
    %c16_i32_62 = arith.constant 16 : i32
    %181 = arith.muli %arg1, %c16_i32_62 : i32
    %c9_i32 = arith.constant 9 : i32
    %182 = arith.addi %181, %c9_i32 : i32
    %183 = arith.index_cast %182 : i32 to index
    %184 = memref.load %arg5[%183] : memref<16xi32, #tpu.memory_space<smem>>
    %185 = arith.index_cast %182 : i32 to index
    %186 = memref.load %arg6[%185] : memref<16xi32, #tpu.memory_space<smem>>
    %187 = arith.index_cast %182 : i32 to index
    %188 = memref.load %arg7[%187] : memref<16xf32, #tpu.memory_space<smem>>
    %189 = arith.index_cast %184 : i32 to index
    %c0_63 = arith.constant 0 : index
    %c0_64 = arith.constant 0 : index
    %190 = vector.load %arg16[%189, %c0_63, %c0_64] : memref<8x8x16xf32, #tpu.memory_space<vmem>>, vector<1x8x16xf32>
    %191 = vector.shape_cast %190 : vector<1x8x16xf32> to vector<8x16xf32>
    %192 = arith.index_cast %186 : i32 to index
    %c0_65 = arith.constant 0 : index
    %c0_66 = arith.constant 0 : index
    %193 = vector.load %arg16[%192, %c0_65, %c0_66] : memref<8x8x16xf32, #tpu.memory_space<vmem>>, vector<1x8x16xf32>
    %194 = vector.shape_cast %193 : vector<1x8x16xf32> to vector<8x16xf32>
    %195 = arith.subf %194, %191 : vector<8x16xf32>
    %196 = vector.broadcast %188 : f32 to vector<8x16xf32>
    %197 = arith.mulf %196, %195 : vector<8x16xf32>
    %198 = arith.addf %191, %197 : vector<8x16xf32>
    %c0_67 = arith.constant 0 : index
    %c144 = arith.constant 144 : index
    %199 = vector.load %arg17[%c0_67, %c144] : memref<8x256xf32, #tpu.memory_space<vmem>>, vector<8x16xf32>
    tpu.vector_store %arg17[%c0_67, %c144], %198 {strides = array<i32>} : memref<8x256xf32, #tpu.memory_space<vmem>>, vector<8x16xf32>,
    %c16_i32_68 = arith.constant 16 : i32
    %200 = arith.muli %arg1, %c16_i32_68 : i32
    %c10_i32 = arith.constant 10 : i32
    %201 = arith.addi %200, %c10_i32 : i32
    %202 = arith.index_cast %201 : i32 to index
    %203 = memref.load %arg5[%202] : memref<16xi32, #tpu.memory_space<smem>>
    %204 = arith.index_cast %201 : i32 to index
    %205 = memref.load %arg6[%204] : memref<16xi32, #tpu.memory_space<smem>>
    %206 = arith.index_cast %201 : i32 to index
    %207 = memref.load %arg7[%206] : memref<16xf32, #tpu.memory_space<smem>>
    %208 = arith.index_cast %203 : i32 to index
    %c0_69 = arith.constant 0 : index
    %c0_70 = arith.constant 0 : index
    %209 = vector.load %arg16[%208, %c0_69, %c0_70] : memref<8x8x16xf32, #tpu.memory_space<vmem>>, vector<1x8x16xf32>
    %210 = vector.shape_cast %209 : vector<1x8x16xf32> to vector<8x16xf32>
    %211 = arith.index_cast %205 : i32 to index
    %c0_71 = arith.constant 0 : index
    %c0_72 = arith.constant 0 : index
    %212 = vector.load %arg16[%211, %c0_71, %c0_72] : memref<8x8x16xf32, #tpu.memory_space<vmem>>, vector<1x8x16xf32>
    %213 = vector.shape_cast %212 : vector<1x8x16xf32> to vector<8x16xf32>
    %214 = arith.subf %213, %210 : vector<8x16xf32>
    %215 = vector.broadcast %207 : f32 to vector<8x16xf32>
    %216 = arith.mulf %215, %214 : vector<8x16xf32>
    %217 = arith.addf %210, %216 : vector<8x16xf32>
    %c0_73 = arith.constant 0 : index
    %c160 = arith.constant 160 : index
    %218 = vector.load %arg17[%c0_73, %c160] : memref<8x256xf32, #tpu.memory_space<vmem>>, vector<8x16xf32>
    tpu.vector_store %arg17[%c0_73, %c160], %217 {strides = array<i32>} : memref<8x256xf32, #tpu.memory_space<vmem>>, vector<8x16xf32>,
    %c16_i32_74 = arith.constant 16 : i32
    %219 = arith.muli %arg1, %c16_i32_74 : i32
    %c11_i32 = arith.constant 11 : i32
    %220 = arith.addi %219, %c11_i32 : i32
    %221 = arith.index_cast %220 : i32 to index
    %222 = memref.load %arg5[%221] : memref<16xi32, #tpu.memory_space<smem>>
    %223 = arith.index_cast %220 : i32 to index
    %224 = memref.load %arg6[%223] : memref<16xi32, #tpu.memory_space<smem>>
    %225 = arith.index_cast %220 : i32 to index
    %226 = memref.load %arg7[%225] : memref<16xf32, #tpu.memory_space<smem>>
    %227 = arith.index_cast %222 : i32 to index
    %c0_75 = arith.constant 0 : index
    %c0_76 = arith.constant 0 : index
    %228 = vector.load %arg16[%227, %c0_75, %c0_76] : memref<8x8x16xf32, #tpu.memory_space<vmem>>, vector<1x8x16xf32>
    %229 = vector.shape_cast %228 : vector<1x8x16xf32> to vector<8x16xf32>
    %230 = arith.index_cast %224 : i32 to index
    %c0_77 = arith.constant 0 : index
    %c0_78 = arith.constant 0 : index
    %231 = vector.load %arg16[%230, %c0_77, %c0_78] : memref<8x8x16xf32, #tpu.memory_space<vmem>>, vector<1x8x16xf32>
    %232 = vector.shape_cast %231 : vector<1x8x16xf32> to vector<8x16xf32>
    %233 = arith.subf %232, %229 : vector<8x16xf32>
    %234 = vector.broadcast %226 : f32 to vector<8x16xf32>
    %235 = arith.mulf %234, %233 : vector<8x16xf32>
    %236 = arith.addf %229, %235 : vector<8x16xf32>
    %c0_79 = arith.constant 0 : index
    %c176 = arith.constant 176 : index
    %237 = vector.load %arg17[%c0_79, %c176] : memref<8x256xf32, #tpu.memory_space<vmem>>, vector<8x16xf32>
    tpu.vector_store %arg17[%c0_79, %c176], %236 {strides = array<i32>} : memref<8x256xf32, #tpu.memory_space<vmem>>, vector<8x16xf32>,
    %c16_i32_80 = arith.constant 16 : i32
    %238 = arith.muli %arg1, %c16_i32_80 : i32
    %c12_i32 = arith.constant 12 : i32
    %239 = arith.addi %238, %c12_i32 : i32
    %240 = arith.index_cast %239 : i32 to index
    %241 = memref.load %arg5[%240] : memref<16xi32, #tpu.memory_space<smem>>
    %242 = arith.index_cast %239 : i32 to index
    %243 = memref.load %arg6[%242] : memref<16xi32, #tpu.memory_space<smem>>
    %244 = arith.index_cast %239 : i32 to index
    %245 = memref.load %arg7[%244] : memref<16xf32, #tpu.memory_space<smem>>
    %246 = arith.index_cast %241 : i32 to index
    %c0_81 = arith.constant 0 : index
    %c0_82 = arith.constant 0 : index
    %247 = vector.load %arg16[%246, %c0_81, %c0_82] : memref<8x8x16xf32, #tpu.memory_space<vmem>>, vector<1x8x16xf32>
    %248 = vector.shape_cast %247 : vector<1x8x16xf32> to vector<8x16xf32>
    %249 = arith.index_cast %243 : i32 to index
    %c0_83 = arith.constant 0 : index
    %c0_84 = arith.constant 0 : index
    %250 = vector.load %arg16[%249, %c0_83, %c0_84] : memref<8x8x16xf32, #tpu.memory_space<vmem>>, vector<1x8x16xf32>
    %251 = vector.shape_cast %250 : vector<1x8x16xf32> to vector<8x16xf32>
    %252 = arith.subf %251, %248 : vector<8x16xf32>
    %253 = vector.broadcast %245 : f32 to vector<8x16xf32>
    %254 = arith.mulf %253, %252 : vector<8x16xf32>
    %255 = arith.addf %248, %254 : vector<8x16xf32>
    %c0_85 = arith.constant 0 : index
    %c192 = arith.constant 192 : index
    %256 = vector.load %arg17[%c0_85, %c192] : memref<8x256xf32, #tpu.memory_space<vmem>>, vector<8x16xf32>
    tpu.vector_store %arg17[%c0_85, %c192], %255 {strides = array<i32>} : memref<8x256xf32, #tpu.memory_space<vmem>>, vector<8x16xf32>,
    %c16_i32_86 = arith.constant 16 : i32
    %257 = arith.muli %arg1, %c16_i32_86 : i32
    %c13_i32 = arith.constant 13 : i32
    %258 = arith.addi %257, %c13_i32 : i32
    %259 = arith.index_cast %258 : i32 to index
    %260 = memref.load %arg5[%259] : memref<16xi32, #tpu.memory_space<smem>>
    %261 = arith.index_cast %258 : i32 to index
    %262 = memref.load %arg6[%261] : memref<16xi32, #tpu.memory_space<smem>>
    %263 = arith.index_cast %258 : i32 to index
    %264 = memref.load %arg7[%263] : memref<16xf32, #tpu.memory_space<smem>>
    %265 = arith.index_cast %260 : i32 to index
    %c0_87 = arith.constant 0 : index
    %c0_88 = arith.constant 0 : index
    %266 = vector.load %arg16[%265, %c0_87, %c0_88] : memref<8x8x16xf32, #tpu.memory_space<vmem>>, vector<1x8x16xf32>
    %267 = vector.shape_cast %266 : vector<1x8x16xf32> to vector<8x16xf32>
    %268 = arith.index_cast %262 : i32 to index
    %c0_89 = arith.constant 0 : index
    %c0_90 = arith.constant 0 : index
    %269 = vector.load %arg16[%268, %c0_89, %c0_90] : memref<8x8x16xf32, #tpu.memory_space<vmem>>, vector<1x8x16xf32>
    %270 = vector.shape_cast %269 : vector<1x8x16xf32> to vector<8x16xf32>
    %271 = arith.subf %270, %267 : vector<8x16xf32>
    %272 = vector.broadcast %264 : f32 to vector<8x16xf32>
    %273 = arith.mulf %272, %271 : vector<8x16xf32>
    %274 = arith.addf %267, %273 : vector<8x16xf32>
    %c0_91 = arith.constant 0 : index
    %c208 = arith.constant 208 : index
    %275 = vector.load %arg17[%c0_91, %c208] : memref<8x256xf32, #tpu.memory_space<vmem>>, vector<8x16xf32>
    tpu.vector_store %arg17[%c0_91, %c208], %274 {strides = array<i32>} : memref<8x256xf32, #tpu.memory_space<vmem>>, vector<8x16xf32>,
    %c16_i32_92 = arith.constant 16 : i32
    %276 = arith.muli %arg1, %c16_i32_92 : i32
    %c14_i32 = arith.constant 14 : i32
    %277 = arith.addi %276, %c14_i32 : i32
    %278 = arith.index_cast %277 : i32 to index
    %279 = memref.load %arg5[%278] : memref<16xi32, #tpu.memory_space<smem>>
    %280 = arith.index_cast %277 : i32 to index
    %281 = memref.load %arg6[%280] : memref<16xi32, #tpu.memory_space<smem>>
    %282 = arith.index_cast %277 : i32 to index
    %283 = memref.load %arg7[%282] : memref<16xf32, #tpu.memory_space<smem>>
    %284 = arith.index_cast %279 : i32 to index
    %c0_93 = arith.constant 0 : index
    %c0_94 = arith.constant 0 : index
    %285 = vector.load %arg16[%284, %c0_93, %c0_94] : memref<8x8x16xf32, #tpu.memory_space<vmem>>, vector<1x8x16xf32>
    %286 = vector.shape_cast %285 : vector<1x8x16xf32> to vector<8x16xf32>
    %287 = arith.index_cast %281 : i32 to index
    %c0_95 = arith.constant 0 : index
    %c0_96 = arith.constant 0 : index
    %288 = vector.load %arg16[%287, %c0_95, %c0_96] : memref<8x8x16xf32, #tpu.memory_space<vmem>>, vector<1x8x16xf32>
    %289 = vector.shape_cast %288 : vector<1x8x16xf32> to vector<8x16xf32>
    %290 = arith.subf %289, %286 : vector<8x16xf32>
    %291 = vector.broadcast %283 : f32 to vector<8x16xf32>
    %292 = arith.mulf %291, %290 : vector<8x16xf32>
    %293 = arith.addf %286, %292 : vector<8x16xf32>
    %c0_97 = arith.constant 0 : index
    %c224 = arith.constant 224 : index
    %294 = vector.load %arg17[%c0_97, %c224] : memref<8x256xf32, #tpu.memory_space<vmem>>, vector<8x16xf32>
    tpu.vector_store %arg17[%c0_97, %c224], %293 {strides = array<i32>} : memref<8x256xf32, #tpu.memory_space<vmem>>, vector<8x16xf32>,
    %c16_i32_98 = arith.constant 16 : i32
    %295 = arith.muli %arg1, %c16_i32_98 : i32
    %c15_i32 = arith.constant 15 : i32
    %296 = arith.addi %295, %c15_i32 : i32
    %297 = arith.index_cast %296 : i32 to index
    %298 = memref.load %arg5[%297] : memref<16xi32, #tpu.memory_space<smem>>
    %299 = arith.index_cast %296 : i32 to index
    %300 = memref.load %arg6[%299] : memref<16xi32, #tpu.memory_space<smem>>
    %301 = arith.index_cast %296 : i32 to index
    %302 = memref.load %arg7[%301] : memref<16xf32, #tpu.memory_space<smem>>
    %303 = arith.index_cast %298 : i32 to index
    %c0_99 = arith.constant 0 : index
    %c0_100 = arith.constant 0 : index
    %304 = vector.load %arg16[%303, %c0_99, %c0_100] : memref<8x8x16xf32, #tpu.memory_space<vmem>>, vector<1x8x16xf32>
    %305 = vector.shape_cast %304 : vector<1x8x16xf32> to vector<8x16xf32>
    %306 = arith.index_cast %300 : i32 to index
    %c0_101 = arith.constant 0 : index
    %c0_102 = arith.constant 0 : index
    %307 = vector.load %arg16[%306, %c0_101, %c0_102] : memref<8x8x16xf32, #tpu.memory_space<vmem>>, vector<1x8x16xf32>
    %308 = vector.shape_cast %307 : vector<1x8x16xf32> to vector<8x16xf32>
    %309 = arith.subf %308, %305 : vector<8x16xf32>
    %310 = vector.broadcast %302 : f32 to vector<8x16xf32>
    %311 = arith.mulf %310, %309 : vector<8x16xf32>
    %312 = arith.addf %305, %311 : vector<8x16xf32>
    %c0_103 = arith.constant 0 : index
    %c240 = arith.constant 240 : index
    %313 = vector.load %arg17[%c0_103, %c240] : memref<8x256xf32, #tpu.memory_space<vmem>>, vector<8x16xf32>
    tpu.vector_store %arg17[%c0_103, %c240], %312 {strides = array<i32>} : memref<8x256xf32, #tpu.memory_space<vmem>>, vector<8x16xf32>,
    %c0_104 = arith.constant 0 : index
    %c0_105 = arith.constant 0 : index
    %314 = vector.load %arg17[%c0_104, %c0_105] : memref<8x256xf32, #tpu.memory_space<vmem>>, vector<8x256xf32>
    %315 = arith.addf %314, %9 : vector<8x256xf32>
    %cst_106 = arith.constant 0.000000e+00 : f32
    %316 = vector.broadcast %cst_106 : f32 to vector<8x256xf32>
    %317 = arith.maximumf %315, %316 : vector<8x256xf32>
    %c0_107 = arith.constant 0 : index
    %c0_108 = arith.constant 0 : index
    %318 = vector.load %arg12[%c0_107, %c0_108] : memref<8x1xf32, #tpu.memory_space<vmem>>, vector<8x1xf32>
    %319 = vector.broadcast %318 : vector<8x1xf32> to vector<8x256xf32>
    %320 = arith.mulf %317, %319 : vector<8x256xf32>
    %cst_109 = arith.constant dense<0.000000e+00> : vector<256xf32>
    %321 = vector.multi_reduction <add>, %320, %cst_109 [0] : vector<8x256xf32> to vector<256xf32>
    %322 = vector.shape_cast %321 : vector<256xf32> to vector<1x256xf32>
    %c0_110 = arith.constant 0 : index
    %323 = memref.load %arg13[%c0_110] : memref<1xf32, #tpu.memory_space<smem>>
    %324 = vector.broadcast %323 : f32 to vector<1x256xf32>
    %325 = arith.addf %322, %324 : vector<1x256xf32>
    %326 = arith.negf %325 : vector<1x256xf32>
    %327 = math.exp %326 : vector<1x256xf32>
    %cst_111 = arith.constant 1.000000e+00 : f32
    %328 = vector.broadcast %cst_111 : f32 to vector<1x256xf32>
    %329 = arith.addf %328, %327 : vector<1x256xf32>
    %330 = arith.divf %328, %329 : vector<1x256xf32>
    %331 = vector.broadcast %330 : vector<1x256xf32> to vector<4x256xf32>
    %332 = arith.mulf %4, %331 : vector<4x256xf32>
    %c0_112 = arith.constant 0 : index
    %c0_113 = arith.constant 0 : index
    %c0_114 = arith.constant 0 : index
    %333 = vector.load %arg14[%c0_112, %c0_113, %c0_114] : memref<1x4x256xf32, #tpu.memory_space<vmem>>, vector<1x4x256xf32>
    %334 = vector.shape_cast %333 : vector<1x4x256xf32> to vector<4x256xf32>
    %335 = vector.shape_cast %332 : vector<4x256xf32> to vector<1x4x256xf32>
    tpu.vector_store %arg14[%c0_112, %c0_113, %c0_114], %335 {strides = array<i32>} : memref<1x4x256xf32, #tpu.memory_space<vmem>>, vector<1x4x256xf32>,
    return
  }
  func.func @transform_0(%arg0: i32, %arg1: i32) -> (i32, i32, i32) {
    %c0_i32 = arith.constant 0 : i32
    %c0_i32_0 = arith.constant 0 : i32
    %c0_i32_1 = arith.constant 0 : i32
    return %arg0, %c0_i32, %c0_i32_0 : i32, i32, i32
  }
  func.func @transform_1(%arg0: i32, %arg1: i32) -> (i32, i32, i32) {
    %c0_i32 = arith.constant 0 : i32
    %c0_i32_0 = arith.constant 0 : i32
    return %arg0, %c0_i32, %arg1 : i32, i32, i32
  }
  func.func @transform_2(%arg0: i32, %arg1: i32) -> (i32, i32) {
    %c0_i32 = arith.constant 0 : i32
    %c0_i32_0 = arith.constant 0 : i32
    %c0_i32_1 = arith.constant 0 : i32
    return %c0_i32, %c0_i32_0 : i32, i32
  }
  func.func @transform_3(%arg0: i32, %arg1: i32) -> i32 {
    %c0_i32 = arith.constant 0 : i32
    %c0_i32_0 = arith.constant 0 : i32
    return %c0_i32 : i32
  }
  func.func @transform_4(%arg0: i32, %arg1: i32) -> i32 {
    %c0_i32 = arith.constant 0 : i32
    %c0_i32_0 = arith.constant 0 : i32
    return %c0_i32 : i32
  }
  func.func @transform_5(%arg0: i32, %arg1: i32) -> i32 {
    %c0_i32 = arith.constant 0 : i32
    %c0_i32_0 = arith.constant 0 : i32
    return %c0_i32 : i32
  }
  func.func @transform_6(%arg0: i32, %arg1: i32) -> (i32, i32) {
    %c0_i32 = arith.constant 0 : i32
    %c0_i32_0 = arith.constant 0 : i32
    %c0_i32_1 = arith.constant 0 : i32
    return %c0_i32, %c0_i32_0 : i32, i32
  }
  func.func @transform_7(%arg0: i32, %arg1: i32) -> (i32, i32) {
    %c0_i32 = arith.constant 0 : i32
    %c0_i32_0 = arith.constant 0 : i32
    %c0_i32_1 = arith.constant 0 : i32
    return %c0_i32, %c0_i32_0 : i32, i32
  }
  func.func @transform_8(%arg0: i32, %arg1: i32) -> (i32, i32) {
    %c0_i32 = arith.constant 0 : i32
    %c0_i32_0 = arith.constant 0 : i32
    %c0_i32_1 = arith.constant 0 : i32
    return %c0_i32, %c0_i32_0 : i32, i32
  }
  func.func @transform_9(%arg0: i32, %arg1: i32) -> (i32, i32) {
    %c0_i32 = arith.constant 0 : i32
    %c0_i32_0 = arith.constant 0 : i32
    %c0_i32_1 = arith.constant 0 : i32
    return %c0_i32, %c0_i32_0 : i32, i32
  }
  func.func @transform_10(%arg0: i32, %arg1: i32) -> (i32, i32) {
    %c0_i32 = arith.constant 0 : i32
    %c0_i32_0 = arith.constant 0 : i32
    %c0_i32_1 = arith.constant 0 : i32
    return %c0_i32, %c0_i32_0 : i32, i32
  }
  func.func @transform_11(%arg0: i32, %arg1: i32) -> i32 {
    %c0_i32 = arith.constant 0 : i32
    %c0_i32_0 = arith.constant 0 : i32
    return %c0_i32 : i32
  }
  func.func @transform_12(%arg0: i32, %arg1: i32) -> (i32, i32, i32) {
    %c0_i32 = arith.constant 0 : i32
    %c0_i32_0 = arith.constant 0 : i32
    return %arg0, %c0_i32, %arg1 : i32, i32, i32
  }
}

</mosaic_0001>

<llo_original>
// kernel: tpu_custom_call.1
$region0: #{tpu_custom_call.1}
  #allocation0 [shape = 'u32[]', space=smem, size = 0x4, offset = 0x4, fixed_abs, tag = 'smem constant byte address 0x4 - core index']
  #allocation1 [shape = 'u32[144,128]{1,0:T(1,128)}', space=vmem, size = 0x12000, scoped, tag = 'internal scratch']
  #allocation2 [shape = 'f32[8,64]{1,0:T(8,128)}', space=vmem, size = 0x1000, scoped, tag = 'scratch operand']
  #allocation3 [shape = 'f32[8,8,16]{2,1,0:T(8,128)}', space=vmem, size = 0x8000, scoped, tag = 'scratch operand']
  #allocation4 [shape = 'f32[8,256]{1,0:T(8,128)}', space=vmem, size = 0x2000, scoped, tag = 'scratch operand']
  #allocation5 [shape = 'f32[1]{0:T(128)S(6)}', space=smem, size = 0x200, scoped, tag = 'scoped memory for tpu_custom_call.1']
  %s0 = inlined_call_operand.vmem [shape: f32[2,4,64], index: 0, kind: input, shape index: {}]
  %s1 = inlined_call_operand.vmem [shape: f32[2,4,256], index: 1, kind: input, shape index: {}]
  %s2 = inlined_call_operand.vmem [shape: f32[8,16], index: 2, kind: input, shape index: {}]
  %s3 = inlined_call_operand.vmem [shape: s32[16], index: 3, kind: input, shape index: {}]
  %s4 = inlined_call_operand.vmem [shape: s32[16], index: 4, kind: input, shape index: {}]
  %s5 = inlined_call_operand.vmem [shape: f32[16], index: 5, kind: input, shape index: {}]
  %s6 = inlined_call_operand.vmem [shape: f32[8,4], index: 6, kind: input, shape index: {}]
  %s7 = inlined_call_operand.vmem [shape: f32[8,1], index: 7, kind: input, shape index: {}]
  %s8 = inlined_call_operand.vmem [shape: f32[8,4], index: 8, kind: input, shape index: {}]
  %s9 = inlined_call_operand.vmem [shape: f32[8,1], index: 9, kind: input, shape index: {}]
  %s10 = inlined_call_operand.vmem [shape: f32[8,1], index: 10, kind: input, shape index: {}]
  %s11 = inlined_call_operand.<no memory space> [shape: f32[1], index: 11, kind: input, shape index: {}]
  %s12 = inlined_call_operand.hbm [shape: f32[2,4,256], index: 12, kind: output, shape index: {}]
  %s13 = sld [smem:[#allocation0]]
  $region97: #{tpu_custom_call.1} parent=0
    _
  %s15 = ssub.s32 1, %s13
  %s16 = scalar_select 0, %s15, %s13
  %17 = sst [smem:[#allocation5]] %s11
  $region1: #{tpu_custom_call.1} parent=0
    #allocation6 [shape = 'u8[512]{0}', space=smem, size = 0x200, scoped, tag = 'input window, operand 3, single buffered']
    #allocation7 [shape = 's32[2]{0}', space=sflag, size = 0x8, scoped, tag = 'scoped memory for tpu_custom_call.1']
    #allocation8 [shape = 's32[2]{0}', space=sflag, size = 0x8, scoped, tag = 'scoped memory for tpu_custom_call.1']
    #allocation9 [shape = 'u8[512]{0}', space=smem, size = 0x200, scoped, tag = 'input window, operand 4, single buffered']
    #allocation10 [shape = 's32[1]{0}', space=sflag, size = 0x4, scoped, tag = 'scoped memory for tpu_custom_call.1']
    #allocation11 [shape = 'u8[512]{0}', space=smem, size = 0x200, scoped, tag = 'input window, operand 5, single buffered']
    #allocation12 [shape = 'u8[8192]{0}', space=vmem, size = 0x2000, scoped, tag = 'output window, operand 0']
    %18 = vsyncpa [#allocation8], 0
    %19 = vsyncpa [#allocation10], 0
    %20 = vsyncpa [#allocation7], 0
    %s21 = scalar_lea.sflag [#allocation7], 1
    %22 = vsyncpa %s21, 0
    loop: start=0, step=1, limit=4
    $region2: #{tpu_custom_call.1} parent=1 // loop_pre_header
      _
    $region3: #{tpu_custom_call.1} parent=1 // loop_header
      %s24 = sphi 0, %s28
      %p25 = scmp.ge.s32.totalorder %s24, 4
      %s31 = sphi 0, %s43
      %s32 = sphi 0, %s39
      %s33 = sphi 0, %s31
      %s34 = sphi 0, %s32
      %s35 = sphi 0, %s33
      %s36 = sphi 0, %s34
      %s46 = sphi 0, %s48
      %s49 = sphi 0, %s46
      %s50 = sphi 0, %s49
      %s66 = sphi 0, %s50
      %s74 = sphi 0, %s76
      %s77 = sphi 0, %s74
      %s78 = sphi 0, %s77
      %s94 = sphi 0, %s78
      %s98 = sphi 0, %s98
      %s100 = sphi 0, %s98
      %s101 = sphi 0, %s100
      %s115 = sphi 0, %s101
      %s119 = sphi 0, %s119
      %s121 = sphi 0, %s119
      %s122 = sphi 0, %s121
      %s136 = sphi 0, %s122
      %s140 = sphi 0, %s140
      %s142 = sphi 0, %s140
      %s143 = sphi 0, %s142
      %s157 = sphi 0, %s143
      %s161 = sphi 0, %s161
      %s163 = sphi 0, %s161
      %s164 = sphi 0, %s163
      %s178 = sphi 0, %s164
      %s182 = sphi 0, %s182
      %s184 = sphi 0, %s182
      %s185 = sphi 0, %s184
      %s199 = sphi 0, %s185
      %s203 = sphi 0, %s203
      %s205 = sphi 0, %s203
      %s206 = sphi 0, %s205
      %s220 = sphi 0, %s206
      %s224 = sphi 0, %s224
      %s226 = sphi 0, %s224
      %s227 = sphi 0, %s226
      %s241 = sphi 0, %s227
      %s245 = sphi 0, %s245
      %s247 = sphi 0, %s245
      %s248 = sphi 0, %s247
      %s262 = sphi 0, %s248
      %s266 = sphi 0, %s266
      %s268 = sphi 0, %s266
      %s269 = sphi 0, %s268
      %s283 = sphi 0, %s269
      %s287 = sphi 0, %s287
      %s289 = sphi 0, %s287
      %s290 = sphi 0, %s289
      %s304 = sphi 0, %s290
      %s312 = sphi 0, %s314
      %s315 = sphi 0, %s312
      %s316 = sphi 0, %s315
      %s332 = sphi 0, %s316
    $region4: #{tpu_custom_call.1} parent=1 // loop_header_branch
      %27 = sbr.rel (%p25) target = $region8
    $region5: #{tpu_custom_call.1} parent=1 // loop_body
      %s29 = ssub.s32 %s24, 1
      %s30 = ssub.s32 %s24, 2
      %s37 = sadd.s32 1, %s32
      %p38 = scmp.ge.s32.totalorder %s37, 1
      %s39 = scalar_select %p38, 0, %s37
      %s40 = sadd.s32 1, %s31
      %s41 = scalar_select %p38, %s40, %s31
      %p42 = scmp.ge.s32.totalorder %s41, 2
      %s43 = scalar_select %p42, 0, %s41
      %s44 = ssub.s32 %s31, %s43
      %p45 = scmp.eq.s32.totalorder %s44, 0
      %s47 = sadd.s32 %s46, 1
      %s48 = scalar_select %p45, %s46, %s47
      %p51 = pneg %p45
      %p52 = scmp.eq.s32.totalorder %s24, 1
      %p53 = por %p51, %p52
      %p54 = scmp.ne.s32.totalorder %s46, %s49
      %p55 = scmp.eq.s32.totalorder %s24, 0
      %p56 = por %p54, %p55
      %p57 = scmp.ne.s32.totalorder %s46, %s49
      %p58 = scmp.eq.s32.totalorder %s29, 1
      %p59 = por %p57, %p58
      %p60 = scmp.ne.s32.totalorder %s49, %s50
      %p61 = scmp.eq.s32.totalorder %s29, 0
      %p62 = por %p60, %p61
      %p63 = scmp.ne.s32.totalorder %s49, %s50
      %p64 = scmp.eq.s32.totalorder %s30, 1
      %p65 = por %p63, %p64
      %p67 = scmp.ne.s32.totalorder %s50, %s66
      %p68 = scmp.eq.s32.totalorder %s30, 0
      %p69 = por %p67, %p68
      %s70 = ssub.s32 %s31, %s43
      %s71 = ssub.s32 %s32, %s39
      %s72 = sor.u32 %s70, %s71
      %p73 = scmp.eq.s32.totalorder %s72, 0
      %s75 = sadd.s32 %s74, 1
      %s76 = scalar_select %p73, %s74, %s75
      %p79 = pneg %p73
      %p80 = scmp.eq.s32.totalorder %s24, 1
      %p81 = por %p79, %p80
      %p82 = scmp.ne.s32.totalorder %s74, %s77
      %p83 = scmp.eq.s32.totalorder %s24, 0
      %p84 = por %p82, %p83
      %p85 = scmp.ne.s32.totalorder %s74, %s77
      %p86 = scmp.eq.s32.totalorder %s29, 1
      %p87 = por %p85, %p86
      %p88 = scmp.ne.s32.totalorder %s77, %s78
      %p89 = scmp.eq.s32.totalorder %s29, 0
      %p90 = por %p88, %p89
      %p91 = scmp.ne.s32.totalorder %s77, %s78
      %p92 = scmp.eq.s32.totalorder %s30, 1
      %p93 = por %p91, %p92
      %p95 = scmp.ne.s32.totalorder %s78, %s94
      %p96 = scmp.eq.s32.totalorder %s30, 0
      %p97 = por %p95, %p96
      %s99 = sadd.s32 %s98, 1
      %p102 = scmp.eq.s32.totalorder %s24, 1
      %p103 = scmp.ne.s32.totalorder %s98, %s100
      %p104 = scmp.eq.s32.totalorder %s24, 0
      %p105 = por %p103, %p104
      %p106 = scmp.ne.s32.totalorder %s98, %s100
      %p107 = scmp.eq.s32.totalorder %s29, 1
      %p108 = por %p106, %p107
      %p109 = scmp.ne.s32.totalorder %s100, %s101
      %p110 = scmp.eq.s32.totalorder %s29, 0
      %p111 = por %p109, %p110
      %p112 = scmp.ne.s32.totalorder %s100, %s101
      %p113 = scmp.eq.s32.totalorder %s30, 1
      %p114 = por %p112, %p113
      %p116 = scmp.ne.s32.totalorder %s101, %s115
      %p117 = scmp.eq.s32.totalorder %s30, 0
      %p118 = por %p116, %p117
      %s120 = sadd.s32 %s119, 1
      %p123 = scmp.eq.s32.totalorder %s24, 1
      %p124 = scmp.ne.s32.totalorder %s119, %s121
      %p125 = scmp.eq.s32.totalorder %s24, 0
      %p126 = por %p124, %p125
      %p127 = scmp.ne.s32.totalorder %s119, %s121
      %p128 = scmp.eq.s32.totalorder %s29, 1
      %p129 = por %p127, %p128
      %p130 = scmp.ne.s32.totalorder %s121, %s122
      %p131 = scmp.eq.s32.totalorder %s29, 0
      %p132 = por %p130, %p131
      %p133 = scmp.ne.s32.totalorder %s121, %s122
      %p134 = scmp.eq.s32.totalorder %s30, 1
      %p135 = por %p133, %p134
      %p137 = scmp.ne.s32.totalorder %s122, %s136
      %p138 = scmp.eq.s32.totalorder %s30, 0
      %p139 = por %p137, %p138
      %s141 = sadd.s32 %s140, 1
      %p144 = scmp.eq.s32.totalorder %s24, 1
      %p145 = scmp.ne.s32.totalorder %s140, %s142
      %p146 = scmp.eq.s32.totalorder %s24, 0
      %p147 = por %p145, %p146
      %p148 = scmp.ne.s32.totalorder %s140, %s142
      %p149 = scmp.eq.s32.totalorder %s29, 1
      %p150 = por %p148, %p149
      %p151 = scmp.ne.s32.totalorder %s142, %s143
      %p152 = scmp.eq.s32.totalorder %s29, 0
      %p153 = por %p151, %p152
      %p154 = scmp.ne.s32.totalorder %s142, %s143
      %p155 = scmp.eq.s32.totalorder %s30, 1
      %p156 = por %p154, %p155
      %p158 = scmp.ne.s32.totalorder %s143, %s157
      %p159 = scmp.eq.s32.totalorder %s30, 0
      %p160 = por %p158, %p159
      %s162 = sadd.s32 %s161, 1
      %p165 = scmp.eq.s32.totalorder %s24, 1
      %p166 = scmp.ne.s32.totalorder %s161, %s163
      %p167 = scmp.eq.s32.totalorder %s24, 0
      %p168 = por %p166, %p167
      %p169 = scmp.ne.s32.totalorder %s161, %s163
      %p170 = scmp.eq.s32.totalorder %s29, 1
      %p171 = por %p169, %p170
      %p172 = scmp.ne.s32.totalorder %s163, %s164
      %p173 = scmp.eq.s32.totalorder %s29, 0
      %p174 = por %p172, %p173
      %p175 = scmp.ne.s32.totalorder %s163, %s164
      %p176 = scmp.eq.s32.totalorder %s30, 1
      %p177 = por %p175, %p176
      %p179 = scmp.ne.s32.totalorder %s164, %s178
      %p180 = scmp.eq.s32.totalorder %s30, 0
      %p181 = por %p179, %p180
      %s183 = sadd.s32 %s182, 1
      %p186 = scmp.eq.s32.totalorder %s24, 1
      %p187 = scmp.ne.s32.totalorder %s182, %s184
      %p188 = scmp.eq.s32.totalorder %s24, 0
      %p189 = por %p187, %p188
      %p190 = scmp.ne.s32.totalorder %s182, %s184
      %p191 = scmp.eq.s32.totalorder %s29, 1
      %p192 = por %p190, %p191
      %p193 = scmp.ne.s32.totalorder %s184, %s185
      %p194 = scmp.eq.s32.totalorder %s29, 0
      %p195 = por %p193, %p194
      %p196 = scmp.ne.s32.totalorder %s184, %s185
      %p197 = scmp.eq.s32.totalorder %s30, 1
      %p198 = por %p196, %p197
      %p200 = scmp.ne.s32.totalorder %s185, %s199
      %p201 = scmp.eq.s32.totalorder %s30, 0
      %p202 = por %p200, %p201
      %s204 = sadd.s32 %s203, 1
      %p207 = scmp.eq.s32.totalorder %s24, 1
      %p208 = scmp.ne.s32.totalorder %s203, %s205
      %p209 = scmp.eq.s32.totalorder %s24, 0
      %p210 = por %p208, %p209
      %p211 = scmp.ne.s32.totalorder %s203, %s205
      %p212 = scmp.eq.s32.totalorder %s29, 1
      %p213 = por %p211, %p212
      %p214 = scmp.ne.s32.totalorder %s205, %s206
      %p215 = scmp.eq.s32.totalorder %s29, 0
      %p216 = por %p214, %p215
      %p217 = scmp.ne.s32.totalorder %s205, %s206
      %p218 = scmp.eq.s32.totalorder %s30, 1
      %p219 = por %p217, %p218
      %p221 = scmp.ne.s32.totalorder %s206, %s220
      %p222 = scmp.eq.s32.totalorder %s30, 0
      %p223 = por %p221, %p222
      %s225 = sadd.s32 %s224, 1
      %p228 = scmp.eq.s32.totalorder %s24, 1
      %p229 = scmp.ne.s32.totalorder %s224, %s226
      %p230 = scmp.eq.s32.totalorder %s24, 0
      %p231 = por %p229, %p230
      %p232 = scmp.ne.s32.totalorder %s224, %s226
      %p233 = scmp.eq.s32.totalorder %s29, 1
      %p234 = por %p232, %p233
      %p235 = scmp.ne.s32.totalorder %s226, %s227
      %p236 = scmp.eq.s32.totalorder %s29, 0
      %p237 = por %p235, %p236
      %p238 = scmp.ne.s32.totalorder %s226, %s227
      %p239 = scmp.eq.s32.totalorder %s30, 1
      %p240 = por %p238, %p239
      %p242 = scmp.ne.s32.totalorder %s227, %s241
      %p243 = scmp.eq.s32.totalorder %s30, 0
      %p244 = por %p242, %p243
      %s246 = sadd.s32 %s245, 1
      %p249 = scmp.eq.s32.totalorder %s24, 1
      %p250 = scmp.ne.s32.totalorder %s245, %s247
      %p251 = scmp.eq.s32.totalorder %s24, 0
      %p252 = por %p250, %p251
      %p253 = scmp.ne.s32.totalorder %s245, %s247
      %p254 = scmp.eq.s32.totalorder %s29, 1
      %p255 = por %p253, %p254
      %p256 = scmp.ne.s32.totalorder %s247, %s248
      %p257 = scmp.eq.s32.totalorder %s29, 0
      %p258 = por %p256, %p257
      %p259 = scmp.ne.s32.totalorder %s247, %s248
      %p260 = scmp.eq.s32.totalorder %s30, 1
      %p261 = por %p259, %p260
      %p263 = scmp.ne.s32.totalorder %s248, %s262
      %p264 = scmp.eq.s32.totalorder %s30, 0
      %p265 = por %p263, %p264
      %s267 = sadd.s32 %s266, 1
      %p270 = scmp.eq.s32.totalorder %s24, 1
      %p271 = scmp.ne.s32.totalorder %s266, %s268
      %p272 = scmp.eq.s32.totalorder %s24, 0
      %p273 = por %p271, %p272
      %p274 = scmp.ne.s32.totalorder %s266, %s268
      %p275 = scmp.eq.s32.totalorder %s29, 1
      %p276 = por %p274, %p275
      %p277 = scmp.ne.s32.totalorder %s268, %s269
      %p278 = scmp.eq.s32.totalorder %s29, 0
      %p279 = por %p277, %p278
      %p280 = scmp.ne.s32.totalorder %s268, %s269
      %p281 = scmp.eq.s32.totalorder %s30, 1
      %p282 = por %p280, %p281
      %p284 = scmp.ne.s32.totalorder %s269, %s283
      %p285 = scmp.eq.s32.totalorder %s30, 0
      %p286 = por %p284, %p285
      %s288 = sadd.s32 %s287, 1
      %p291 = scmp.eq.s32.totalorder %s24, 1
      %p292 = scmp.ne.s32.totalorder %s287, %s289
      %p293 = scmp.eq.s32.totalorder %s24, 0
      %p294 = por %p292, %p293
      %p295 = scmp.ne.s32.totalorder %s287, %s289
      %p296 = scmp.eq.s32.totalorder %s29, 1
      %p297 = por %p295, %p296
      %p298 = scmp.ne.s32.totalorder %s289, %s290
      %p299 = scmp.eq.s32.totalorder %s29, 0
      %p300 = por %p298, %p299
      %p301 = scmp.ne.s32.totalorder %s289, %s290
      %p302 = scmp.eq.s32.totalorder %s30, 1
      %p303 = por %p301, %p302
      %p305 = scmp.ne.s32.totalorder %s290, %s304
      %p306 = scmp.eq.s32.totalorder %s30, 0
      %p307 = por %p305, %p306
      %s308 = ssub.s32 %s31, %s43
      %s309 = ssub.s32 %s32, %s39
      %s310 = sor.u32 %s308, %s309
      %p311 = scmp.eq.s32.totalorder %s310, 0
      %s313 = sadd.s32 %s312, 1
      %s314 = scalar_select %p311, %s312, %s313
      %p317 = pneg %p311
      %p318 = scmp.eq.s32.totalorder %s24, 1
      %p319 = por %p317, %p318
      %p320 = scmp.ne.s32.totalorder %s312, %s315
      %p321 = scmp.eq.s32.totalorder %s24, 0
      %p322 = por %p320, %p321
      %p323 = scmp.ne.s32.totalorder %s312, %s315
      %p324 = scmp.eq.s32.totalorder %s29, 1
      %p325 = por %p323, %p324
      %p326 = scmp.ne.s32.totalorder %s315, %s316
      %p327 = scmp.eq.s32.totalorder %s29, 0
      %p328 = por %p326, %p327
      %p329 = scmp.ne.s32.totalorder %s315, %s316
      %p330 = scmp.eq.s32.totalorder %s30, 1
      %p331 = por %p329, %p330
      %p333 = scmp.ne.s32.totalorder %s316, %s332
      %p334 = scmp.eq.s32.totalorder %s30, 0
      %p335 = por %p333, %p334
      %p336 = scmp.le.s32.totalorder 1, %s24
      %p337 = scmp.lt.s32.totalorder %s24, 3
      %p338 = pnand %p336, %p337
      %p339 = pneg %p338
      // Predicated region
      $region9: #{tpu_custom_call.1} parent=5 // pred_check
        _
      $region10: #{tpu_custom_call.1} parent=5 // pred_check_branch
        %341 = sbr.rel (%p338) target = $region12
      $region11: #{tpu_custom_call.1} parent=5 // pred_region
        %s342 = ssub.s32 %s24, 1
        // Predicated region
        $region13: #{tpu_custom_call.1} parent=11 // pred_check
          %p343 = pneg %p111
        $region14: #{tpu_custom_call.1} parent=11 // pred_check_branch
          %345 = sbr.rel (%p343) target = $region16
        $region15: #{tpu_custom_call.1} parent=11 // pred_region
          _
        $region16: #{tpu_custom_call.1} parent=11 // pred_fallthru
          _
        // Predicated region
        $region17: #{tpu_custom_call.1} parent=11 // pred_check
          %p346 = pneg %p132
        $region18: #{tpu_custom_call.1} parent=11 // pred_check_branch
          %348 = sbr.rel (%p346) target = $region20
        $region19: #{tpu_custom_call.1} parent=11 // pred_region
          %s350 = ssub.s32 16, 16
          %351 = vsyncadd [#allocation8], %s350
          %s353 = sshll.u32 %s3, 4
          %s354 = int_to_ptr.vmem [resolvable:$true] %s353
          %356 = dma.vmem_to_smem %s354, 16, [#allocation6], [#allocation8]
        $region20: #{tpu_custom_call.1} parent=11 // pred_fallthru
          _
        // Predicated region
        $region21: #{tpu_custom_call.1} parent=11 // pred_check
          %p357 = pneg %p153
        $region22: #{tpu_custom_call.1} parent=11 // pred_check_branch
          %359 = sbr.rel (%p357) target = $region24
        $region23: #{tpu_custom_call.1} parent=11 // pred_region
          %s361 = ssub.s32 16, 16
          %362 = vsyncadd [#allocation10], %s361
          %s364 = sshll.u32 %s4, 4
          %s365 = int_to_ptr.vmem [resolvable:$true] %s364
          %367 = dma.vmem_to_smem %s365, 16, [#allocation9], [#allocation10]
        $region24: #{tpu_custom_call.1} parent=11 // pred_fallthru
          _
        // Predicated region
        $region25: #{tpu_custom_call.1} parent=11 // pred_check
          %p368 = pneg %p174
        $region26: #{tpu_custom_call.1} parent=11 // pred_check_branch
          %370 = sbr.rel (%p368) target = $region28
        $region27: #{tpu_custom_call.1} parent=11 // pred_region
          %s372 = ssub.s32 16, 16
          %373 = vsyncadd [#allocation10], %s372
          %s375 = sshll.u32 %s5, 4
          %s376 = int_to_ptr.vmem [resolvable:$true] %s375
          %378 = dma.vmem_to_smem %s376, 16, [#allocation11], [#allocation10]
        $region28: #{tpu_custom_call.1} parent=11 // pred_fallthru
          _
        // Predicated region
        $region29: #{tpu_custom_call.1} parent=11 // pred_check
          %p379 = pneg %p195
        $region30: #{tpu_custom_call.1} parent=11 // pred_check_branch
          %381 = sbr.rel (%p379) target = $region32
        $region31: #{tpu_custom_call.1} parent=11 // pred_region
          _
        $region32: #{tpu_custom_call.1} parent=11 // pred_fallthru
          _
        // Predicated region
        $region33: #{tpu_custom_call.1} parent=11 // pred_check
          %p382 = pneg %p216
        $region34: #{tpu_custom_call.1} parent=11 // pred_check_branch
          %384 = sbr.rel (%p382) target = $region36
        $region35: #{tpu_custom_call.1} parent=11 // pred_region
          _
        $region36: #{tpu_custom_call.1} parent=11 // pred_fallthru
          _
        // Predicated region
        $region37: #{tpu_custom_call.1} parent=11 // pred_check
          %p385 = pneg %p237
        $region38: #{tpu_custom_call.1} parent=11 // pred_check_branch
          %387 = sbr.rel (%p385) target = $region40
        $region39: #{tpu_custom_call.1} parent=11 // pred_region
          _
        $region40: #{tpu_custom_call.1} parent=11 // pred_fallthru
          _
        // Predicated region
        $region41: #{tpu_custom_call.1} parent=11 // pred_check
          %p388 = pneg %p258
        $region42: #{tpu_custom_call.1} parent=11 // pred_check_branch
          %390 = sbr.rel (%p388) target = $region44
        $region43: #{tpu_custom_call.1} parent=11 // pred_region
          _
        $region44: #{tpu_custom_call.1} parent=11 // pred_fallthru
          _
        // Predicated region
        $region45: #{tpu_custom_call.1} parent=11 // pred_check
          %p391 = pneg %p279
        $region46: #{tpu_custom_call.1} parent=11 // pred_check_branch
          %393 = sbr.rel (%p391) target = $region48
        $region47: #{tpu_custom_call.1} parent=11 // pred_region
          _
        $region48: #{tpu_custom_call.1} parent=11 // pred_fallthru
          _
        // Predicated region
        $region49: #{tpu_custom_call.1} parent=11 // pred_check
          %p394 = pneg %p300
        $region50: #{tpu_custom_call.1} parent=11 // pred_check_branch
          %396 = sbr.rel (%p394) target = $region52
        $region51: #{tpu_custom_call.1} parent=11 // pred_region
          _
        $region52: #{tpu_custom_call.1} parent=11 // pred_fallthru
          _
      $region12: #{tpu_custom_call.1} parent=5 // pred_fallthru
        _
      %p397 = scmp.lt.s32.totalorder %s24, 2
      // Predicated region
      $region53: #{tpu_custom_call.1} parent=5 // pred_check
        %p398 = pneg %p397
      $region54: #{tpu_custom_call.1} parent=5 // pred_check_branch
        %400 = sbr.rel (%p398) target = $region56
      $region55: #{tpu_custom_call.1} parent=5 // pred_region
        // Predicated region
        $region57: #{tpu_custom_call.1} parent=55 // pred_check
          %p401 = pneg %p56
        $region58: #{tpu_custom_call.1} parent=55 // pred_check_branch
          %403 = sbr.rel (%p401) target = $region60
        $region59: #{tpu_custom_call.1} parent=55 // pred_region
          %p404 = scmp.lt.s32.totalorder %s31, 1
          %s405 = scalar_select %p404, %s31, 1
          %s406 = smul.addr %s405, 4
          %s407 = scalar_lea.vmem %s0, %s406
        $region60: #{tpu_custom_call.1} parent=55 // pred_fallthru
          _
        // Predicated region
        $region61: #{tpu_custom_call.1} parent=55 // pred_check
          %p408 = pneg %p84
        $region62: #{tpu_custom_call.1} parent=55 // pred_check_branch
          %410 = sbr.rel (%p408) target = $region64
        $region63: #{tpu_custom_call.1} parent=55 // pred_region
          %s411 = smul.u32 2, %s32
          %p412 = scmp.lt.s32.totalorder %s31, 1
          %s413 = scalar_select %p412, %s31, 1
          %p414 = scmp.lt.s32.totalorder %s411, 1
          %s415 = scalar_select %p414, %s411, 1
          %s416 = smul.addr %s413, 2
          %s417 = sadd.s32 %s415, %s416
          %s418 = smul.addr %s417, 4
          %s419 = scalar_lea.vmem %s1, %s418
          %s420 = smul.u32 2, %s32
        $region64: #{tpu_custom_call.1} parent=55 // pred_fallthru
          _
      $region56: #{tpu_custom_call.1} parent=5 // pred_fallthru
        _
      %p421 = scmp.le.s32.totalorder 1, %s24
      %p422 = scmp.lt.s32.totalorder %s24, 3
      %p423 = pnand %p421, %p422
      %p424 = pneg %p423
      // Predicated region
      $region65: #{tpu_custom_call.1} parent=5 // pred_check
        _
      $region66: #{tpu_custom_call.1} parent=5 // pred_check_branch
        %426 = sbr.rel (%p423) target = $region68
      $region67: #{tpu_custom_call.1} parent=5 // pred_region
        %s427 = ssub.s32 %s24, 1
        // Predicated region
        $region69: #{tpu_custom_call.1} parent=67 // pred_check
          %p428 = pneg %p132
        $region70: #{tpu_custom_call.1} parent=67 // pred_check_branch
          %430 = sbr.rel (%p428) target = $region72
        $region71: #{tpu_custom_call.1} parent=67 // pred_region
          %431 = dma.done [#allocation8], 16
        $region72: #{tpu_custom_call.1} parent=67 // pred_fallthru
          _
        // Predicated region
        $region73: #{tpu_custom_call.1} parent=67 // pred_check
          %p432 = pneg %p153
        $region74: #{tpu_custom_call.1} parent=67 // pred_check_branch
          %434 = sbr.rel (%p432) target = $region76
        $region75: #{tpu_custom_call.1} parent=67 // pred_region
          %435 = dma.done [#allocation10], 16
        $region76: #{tpu_custom_call.1} parent=67 // pred_fallthru
          _
        // Predicated region
        $region77: #{tpu_custom_call.1} parent=67 // pred_check
          %p436 = pneg %p174
        $region78: #{tpu_custom_call.1} parent=67 // pred_check_branch
          %438 = sbr.rel (%p436) target = $region80
        $region79: #{tpu_custom_call.1} parent=67 // pred_region
          %439 = dma.done [#allocation10], 16
        $region80: #{tpu_custom_call.1} parent=67 // pred_fallthru
          _
        %440 = sfence
        %p441 = scmp.lt.s32.totalorder %s33, 1
        %s442 = scalar_select %p441, %s33, 1
        %s443 = smul.addr %s442, 4
        %s444 = scalar_lea.vmem %s0, %s443
        %p445 = pneg %p62
        %p446 = pneg %p59
        %s447 = smul.u32 2, %s34
        %p448 = scmp.lt.s32.totalorder %s33, 1
        %s449 = scalar_select %p448, %s33, 1
        %p450 = scmp.lt.s32.totalorder %s447, 1
        %s451 = scalar_select %p450, %s447, 1
        %s452 = smul.addr %s449, 2
        %s453 = sadd.s32 %s451, %s452
        %s454 = smul.addr %s453, 4
        %s455 = scalar_lea.vmem %s1, %s454
        %p456 = pneg %p90
        %p457 = pneg %p87
        %p458 = pneg %p111
        %p459 = pneg %p108
        %p460 = pneg %p132
        %p461 = pneg %p129
        %p462 = pneg %p153
        %p463 = pneg %p150
        %p464 = pneg %p174
        %p465 = pneg %p171
        %p466 = pneg %p195
        %p467 = pneg %p192
        %p468 = pneg %p216
        %p469 = pneg %p213
        %p470 = pneg %p237
        %p471 = pneg %p234
        %p472 = pneg %p258
        %p473 = pneg %p255
        %p474 = pneg %p279
        %p475 = pneg %p276
        %p476 = pneg %p300
        %p477 = pneg %p297
        %p478 = pneg %p328
        %p479 = pneg %p325
        %s480 = sand.u32 %s315, 1
        %s481 = scalar_lea.sflag [#allocation7], %s480
        %s482 = sand.u32 %s315, 1
        %s483 = smul.addr %s482, 8
        %s484 = scalar_lea.vmem [#allocation12], %s483
        %p485 = scmp.lt.s32.totalorder %s33, 1
        %s486 = scalar_select %p485, %s33, 1
        %s487 = smul.addr %s486, 4
        %s488 = scalar_lea.vmem %s0, %s487
        %s489 = smul.u32 2, %s34
        %p490 = scmp.lt.s32.totalorder %s33, 1
        %s491 = scalar_select %p490, %s33, 1
        %p492 = scmp.lt.s32.totalorder %s489, 1
        %s493 = scalar_select %p492, %s489, 1
        %s494 = smul.addr %s491, 2
        %s495 = sadd.s32 %s493, %s494
        %s496 = smul.addr %s495, 4
        %s497 = scalar_lea.vmem %s1, %s496
        %s498 = smul.u32 2, %s34
        %s499 = smul.u32 2, %s34
        %p500 = scmp.eq.s32.totalorder %s34, 0
        // Predicated region
        $region81: #{tpu_custom_call.1} parent=67 // pred_check
          %p501 = pneg %p500
        $region82: #{tpu_custom_call.1} parent=67 // pred_check_branch
          %503 = sbr.rel (%p501) target = $region84
        $region83: #{tpu_custom_call.1} parent=67 // pred_region
          %v504 = vld [vmem:[%s6] sm:$0xff]
          %v505 = vld [vmem:[%s488] sm:$0xf]
          %v506 = vld [vmem:[%s7] sm:$0xff]
          %508 = vset.pattern.permute.xlu0 0
          %509 = vperm.xlu0 %508, %v506
          %v510 = vpop.permute.xlu0 %509
          %vm512 = vcmask 31744
          %v514 = vsel %vm512, %v504, 0
          %vm516 = vcmask 1043456
          %v518 = vsel %vm516, %v505, 0
          %520 = vmatprep.subr.mxu0 0.0
          %521 = vmatpush1.msra.mxu0 %v518
          %522 = vmatprep.subr.mxu0 0.0
          %523 = vmatpush1.msra.mxu0 0.0
          %524 = vmatprep.subr.mxu0 0.0
          %525 = vmatpush1.msra.mxu0 0.0
          %526 = vmatprep.subr.mxu0 0.0
          %527 = vmatpush1.msra.mxu0 0.0
          %528 = vmatprep.subr.mxu0 0.0
          %529 = vmatpush1.msra.mxu0 0.0
          %530 = vmatprep.subr.mxu0 0.0
          %531 = vmatpush1.msra.mxu0 0.0
          %532 = vmatprep.subr.mxu0 0.0
          %533 = vmatpush1.msra.mxu0 0.0
          %534 = vmatprep.subr.mxu0 0.0
          %535 = vmatpush1.msra.mxu0 0.0
          %536 = vmatprep.subr.mxu0 0.0
          %537 = vmatpush1.msra.mxu0 0.0
          %538 = vmatprep.subr.mxu0 0.0
          %539 = vmatpush1.msra.mxu0 0.0
          %540 = vmatprep.subr.mxu0 0.0
          %541 = vmatpush1.msra.mxu0 0.0
          %542 = vmatprep.subr.mxu0 0.0
          %543 = vmatpush1.msra.mxu0 0.0
          %544 = vmatprep.subr.mxu0 0.0
          %545 = vmatpush1.msra.mxu0 0.0
          %546 = vmatprep.subr.mxu0 0.0
          %547 = vmatpush1.msra.mxu0 0.0
          %548 = vmatprep.subr.mxu0 0.0
          %549 = vmatpush1.msra.mxu0 0.0
          %550 = vmatprep.subr.mxu0 0.0
          %551 = vmatpush1.msra.mxu0 0.0
          %552 = vmatprep.subr.mxu0 0.0
          %553 = vmatpush1.msra.mxu0 0.0
          %554 = vmatprep.subr.mxu0 0.0
          %555 = vmatpush1.msra.mxu0 0.0
          %556 = vmatprep.subr.mxu0 0.0
          %557 = vmatpush1.msra.mxu0 0.0
          %558 = vmatprep.subr.mxu0 0.0
          %559 = vmatpush1.msra.mxu0 0.0
          %560 = vmatprep.subr.mxu0 0.0
          %561 = vmatpush1.msra.mxu0 0.0
          %562 = vmatprep.subr.mxu0 0.0
          %563 = vmatpush1.msra.mxu0 0.0
          %564 = vmatprep.subr.mxu0 0.0
          %565 = vmatpush1.msra.mxu0 0.0
          %566 = vmatprep.subr.mxu0 0.0
          %567 = vmatpush1.msra.mxu0 0.0
          %568 = vmatprep.subr.mxu0 0.0
          %569 = vmatpush1.msra.mxu0 0.0
          %570 = vmatprep.subr.mxu0 0.0
          %571 = vmatpush1.msra.mxu0 0.0
          %572 = vmatprep.subr.mxu0 0.0
          %573 = vmatpush1.msra.mxu0 0.0
          %574 = vmatprep.subr.mxu0 0.0
          %575 = vmatpush1.msra.mxu0 0.0
          %576 = vmatprep.subr.mxu0 0.0
          %577 = vmatpush1.msra.mxu0 0.0
          %578 = vmatprep.subr.mxu0 0.0
          %579 = vmatpush1.msra.mxu0 0.0
          %580 = vmatprep.subr.mxu0 0.0
          %581 = vmatpush1.msra.mxu0 0.0
          %582 = vmatprep.subr.mxu0 0.0
          %583 = vmatpush1.msra.mxu0 0.0
          %584 = vmatprep.mubr.f32.mxu0 0.0
          %585 = vmatmul.mubr.f32.gmra.mrb[0].mxu0 %v514
          %v586 = vpop.f32.mrb[0].mxu0
          %v587 = vadd.f32 %v510, %v586
          %v588 = vpop.f32.mrb[0].mxu0
          %589 = vdwg.mxu0
          %vm590 = vcmask 523264
          %591 = vst.msk [vmem:[#allocation2] sm:$0xff] %vm590, %v587
          %v592 = vld [vmem:[#allocation2] sm:$0xff]
          %v593 = vld [vmem:[%s2] sm:$0xff]
          %vm594 = vcmask 64512
          %v596 = vsel %vm594, %v592, 0
          %598 = vmatprep.subr.mxu0 0.0
          %599 = vmatpush1.msra.mxu0 %v593
          %600 = vmatprep.subr.mxu0 0.0
          %601 = vmatpush1.msra.mxu0 0.0
          %602 = vmatprep.subr.mxu0 0.0
          %603 = vmatpush1.msra.mxu0 0.0
          %604 = vmatprep.subr.mxu0 0.0
          %605 = vmatpush1.msra.mxu0 0.0
          %606 = vmatprep.subr.mxu0 0.0
          %607 = vmatpush1.msra.mxu0 0.0
          %608 = vmatprep.subr.mxu0 0.0
          %609 = vmatpush1.msra.mxu0 0.0
          %610 = vmatprep.subr.mxu0 0.0
          %611 = vmatpush1.msra.mxu0 0.0
          %612 = vmatprep.subr.mxu0 0.0
          %613 = vmatpush1.msra.mxu0 0.0
          %614 = vmatprep.subr.mxu0 0.0
          %615 = vmatpush1.msra.mxu0 0.0
          %616 = vmatprep.subr.mxu0 0.0
          %617 = vmatpush1.msra.mxu0 0.0
          %618 = vmatprep.subr.mxu0 0.0
          %619 = vmatpush1.msra.mxu0 0.0
          %620 = vmatprep.subr.mxu0 0.0
          %621 = vmatpush1.msra.mxu0 0.0
          %622 = vmatprep.subr.mxu0 0.0
          %623 = vmatpush1.msra.mxu0 0.0
          %624 = vmatprep.subr.mxu0 0.0
          %625 = vmatpush1.msra.mxu0 0.0
          %626 = vmatprep.subr.mxu0 0.0
          %627 = vmatpush1.msra.mxu0 0.0
          %628 = vmatprep.subr.mxu0 0.0
          %629 = vmatpush1.msra.mxu0 0.0
          %630 = vmatprep.subr.mxu0 0.0
          %631 = vmatpush1.msra.mxu0 0.0
          %632 = vmatprep.subr.mxu0 0.0
          %633 = vmatpush1.msra.mxu0 0.0
          %634 = vmatprep.subr.mxu0 0.0
          %635 = vmatpush1.msra.mxu0 0.0
          %636 = vmatprep.subr.mxu0 0.0
          %637 = vmatpush1.msra.mxu0 0.0
          %638 = vmatprep.subr.mxu0 0.0
          %639 = vmatpush1.msra.mxu0 0.0
          %640 = vmatprep.subr.mxu0 0.0
          %641 = vmatpush1.msra.mxu0 0.0
          %642 = vmatprep.subr.mxu0 0.0
          %643 = vmatpush1.msra.mxu0 0.0
          %644 = vmatprep.subr.mxu0 0.0
          %645 = vmatpush1.msra.mxu0 0.0
          %646 = vmatprep.subr.mxu0 0.0
          %647 = vmatpush1.msra.mxu0 0.0
          %648 = vmatprep.subr.mxu0 0.0
          %649 = vmatpush1.msra.mxu0 0.0
          %650 = vmatprep.subr.mxu0 0.0
          %651 = vmatpush1.msra.mxu0 0.0
          %652 = vmatprep.subr.mxu0 0.0
          %653 = vmatpush1.msra.mxu0 0.0
          %654 = vmatprep.subr.mxu0 0.0
          %655 = vmatpush1.msra.mxu0 0.0
          %656 = vmatprep.subr.mxu0 0.0
          %657 = vmatpush1.msra.mxu0 0.0
          %658 = vmatprep.subr.mxu0 0.0
          %659 = vmatpush1.msra.mxu0 0.0
          %660 = vmatprep.subr.mxu0 0.0
          %661 = vmatpush1.msra.mxu0 0.0
          %662 = vmatprep.mubr.f32.mxu0 0.0
          %663 = vmatmul.mubr.f32.gmra.mrb[0].mxu0 %v596
          %v664 = vpop.f32.mrb[0].mxu0
          %v665 = vadd.f32 0.0, %v664
          %v666 = vpop.f32.mrb[0].mxu0
          %667 = vdwg.mxu0
          %vm668 = vcmask 130048
          %669 = vst.msk [vmem:[#allocation3] sm:$0xff] %vm668, %v665
          %v670 = vld [vmem:[#allocation2] sm:$0xff]
          %v671 = vld [vmem:[%s2] sm:$0xff]
          %673 = vrot.lane.b32.xlu0 %v670, 120
          %v674 = vpop.permute.xlu0 %673
          %v675 = vsel %vm594, %v674, 0
          %677 = vmatprep.subr.mxu0 0.0
          %678 = vmatpush1.msra.mxu0 %v671
          %679 = vmatprep.subr.mxu0 0.0
          %680 = vmatpush1.msra.mxu0 0.0
          %681 = vmatprep.subr.mxu0 0.0
          %682 = vmatpush1.msra.mxu0 0.0
          %683 = vmatprep.subr.mxu0 0.0
          %684 = vmatpush1.msra.mxu0 0.0
          %685 = vmatprep.subr.mxu0 0.0
          %686 = vmatpush1.msra.mxu0 0.0
          %687 = vmatprep.subr.mxu0 0.0
          %688 = vmatpush1.msra.mxu0 0.0
          %689 = vmatprep.subr.mxu0 0.0
          %690 = vmatpush1.msra.mxu0 0.0
          %691 = vmatprep.subr.mxu0 0.0
          %692 = vmatpush1.msra.mxu0 0.0
          %693 = vmatprep.subr.mxu0 0.0
          %694 = vmatpush1.msra.mxu0 0.0
          %695 = vmatprep.subr.mxu0 0.0
          %696 = vmatpush1.msra.mxu0 0.0
          %697 = vmatprep.subr.mxu0 0.0
          %698 = vmatpush1.msra.mxu0 0.0
          %699 = vmatprep.subr.mxu0 0.0
          %700 = vmatpush1.msra.mxu0 0.0
          %701 = vmatprep.subr.mxu0 0.0
          %702 = vmatpush1.msra.mxu0 0.0
          %703 = vmatprep.subr.mxu0 0.0
          %704 = vmatpush1.msra.mxu0 0.0
          %705 = vmatprep.subr.mxu0 0.0
          %706 = vmatpush1.msra.mxu0 0.0
          %707 = vmatprep.subr.mxu0 0.0
          %708 = vmatpush1.msra.mxu0 0.0
          %709 = vmatprep.subr.mxu0 0.0
          %710 = vmatpush1.msra.mxu0 0.0
          %711 = vmatprep.subr.mxu0 0.0
          %712 = vmatpush1.msra.mxu0 0.0
          %713 = vmatprep.subr.mxu0 0.0
          %714 = vmatpush1.msra.mxu0 0.0
          %715 = vmatprep.subr.mxu0 0.0
          %716 = vmatpush1.msra.mxu0 0.0
          %717 = vmatprep.subr.mxu0 0.0
          %718 = vmatpush1.msra.mxu0 0.0
          %719 = vmatprep.subr.mxu0 0.0
          %720 = vmatpush1.msra.mxu0 0.0
          %721 = vmatprep.subr.mxu0 0.0
          %722 = vmatpush1.msra.mxu0 0.0
          %723 = vmatprep.subr.mxu0 0.0
          %724 = vmatpush1.msra.mxu0 0.0
          %725 = vmatprep.subr.mxu0 0.0
          %726 = vmatpush1.msra.mxu0 0.0
          %727 = vmatprep.subr.mxu0 0.0
          %728 = vmatpush1.msra.mxu0 0.0
          %729 = vmatprep.subr.mxu0 0.0
          %730 = vmatpush1.msra.mxu0 0.0
          %731 = vmatprep.subr.mxu0 0.0
          %732 = vmatpush1.msra.mxu0 0.0
          %733 = vmatprep.subr.mxu0 0.0
          %734 = vmatpush1.msra.mxu0 0.0
          %735 = vmatprep.subr.mxu0 0.0
          %736 = vmatpush1.msra.mxu0 0.0
          %737 = vmatprep.subr.mxu0 0.0
          %738 = vmatpush1.msra.mxu0 0.0
          %739 = vmatprep.subr.mxu0 0.0
          %740 = vmatpush1.msra.mxu0 0.0
          %741 = vmatprep.mubr.f32.mxu0 0.0
          %742 = vmatmul.mubr.f32.gmra.mrb[0].mxu0 %v675
          %v743 = vpop.f32.mrb[0].mxu0
          %v744 = vadd.f32 0.0, %v743
          %v745 = vpop.f32.mrb[0].mxu0
          %746 = vdwg.mxu0
          %s747 = scalar_lea.vmem [#allocation3], 8
          %748 = vst.msk [vmem:[%s747] sm:$0xff] %vm668, %v744
          %v749 = vld [vmem:[#allocation2] sm:$0xff]
          %v750 = vld [vmem:[%s2] sm:$0xff]
          %752 = vrot.lane.b32.xlu0 %v749, 112
          %v753 = vpop.permute.xlu0 %752
          %v754 = vsel %vm594, %v753, 0
          %756 = vmatprep.subr.mxu0 0.0
          %757 = vmatpush1.msra.mxu0 %v750
          %758 = vmatprep.subr.mxu0 0.0
          %759 = vmatpush1.msra.mxu0 0.0
          %760 = vmatprep.subr.mxu0 0.0
          %761 = vmatpush1.msra.mxu0 0.0
          %762 = vmatprep.subr.mxu0 0.0
          %763 = vmatpush1.msra.mxu0 0.0
          %764 = vmatprep.subr.mxu0 0.0
          %765 = vmatpush1.msra.mxu0 0.0
          %766 = vmatprep.subr.mxu0 0.0
          %767 = vmatpush1.msra.mxu0 0.0
          %768 = vmatprep.subr.mxu0 0.0
          %769 = vmatpush1.msra.mxu0 0.0
          %770 = vmatprep.subr.mxu0 0.0
          %771 = vmatpush1.msra.mxu0 0.0
          %772 = vmatprep.subr.mxu0 0.0
          %773 = vmatpush1.msra.mxu0 0.0
          %774 = vmatprep.subr.mxu0 0.0
          %775 = vmatpush1.msra.mxu0 0.0
          %776 = vmatprep.subr.mxu0 0.0
          %777 = vmatpush1.msra.mxu0 0.0
          %778 = vmatprep.subr.mxu0 0.0
          %779 = vmatpush1.msra.mxu0 0.0
          %780 = vmatprep.subr.mxu0 0.0
          %781 = vmatpush1.msra.mxu0 0.0
          %782 = vmatprep.subr.mxu0 0.0
          %783 = vmatpush1.msra.mxu0 0.0
          %784 = vmatprep.subr.mxu0 0.0
          %785 = vmatpush1.msra.mxu0 0.0
          %786 = vmatprep.subr.mxu0 0.0
          %787 = vmatpush1.msra.mxu0 0.0
          %788 = vmatprep.subr.mxu0 0.0
          %789 = vmatpush1.msra.mxu0 0.0
          %790 = vmatprep.subr.mxu0 0.0
          %791 = vmatpush1.msra.mxu0 0.0
          %792 = vmatprep.subr.mxu0 0.0
          %793 = vmatpush1.msra.mxu0 0.0
          %794 = vmatprep.subr.mxu0 0.0
          %795 = vmatpush1.msra.mxu0 0.0
          %796 = vmatprep.subr.mxu0 0.0
          %797 = vmatpush1.msra.mxu0 0.0
          %798 = vmatprep.subr.mxu0 0.0
          %799 = vmatpush1.msra.mxu0 0.0
          %800 = vmatprep.subr.mxu0 0.0
          %801 = vmatpush1.msra.mxu0 0.0
          %802 = vmatprep.subr.mxu0 0.0
          %803 = vmatpush1.msra.mxu0 0.0
          %804 = vmatprep.subr.mxu0 0.0
          %805 = vmatpush1.msra.mxu0 0.0
          %806 = vmatprep.subr.mxu0 0.0
          %807 = vmatpush1.msra.mxu0 0.0
          %808 = vmatprep.subr.mxu0 0.0
          %809 = vmatpush1.msra.mxu0 0.0
          %810 = vmatprep.subr.mxu0 0.0
          %811 = vmatpush1.msra.mxu0 0.0
          %812 = vmatprep.subr.mxu0 0.0
          %813 = vmatpush1.msra.mxu0 0.0
          %814 = vmatprep.subr.mxu0 0.0
          %815 = vmatpush1.msra.mxu0 0.0
          %816 = vmatprep.subr.mxu0 0.0
          %817 = vmatpush1.msra.mxu0 0.0
          %818 = vmatprep.subr.mxu0 0.0
          %819 = vmatpush1.msra.mxu0 0.0
          %820 = vmatprep.mubr.f32.mxu0 0.0
          %821 = vmatmul.mubr.f32.gmra.mrb[0].mxu0 %v754
          %v822 = vpop.f32.mrb[0].mxu0
          %v823 = vadd.f32 0.0, %v822
          %v824 = vpop.f32.mrb[0].mxu0
          %825 = vdwg.mxu0
          %s826 = scalar_lea.vmem [#allocation3], 16
          %827 = vst.msk [vmem:[%s826] sm:$0xff] %vm668, %v823
          %v828 = vld [vmem:[#allocation2] sm:$0xff]
          %v829 = vld [vmem:[%s2] sm:$0xff]
          %831 = vrot.lane.b32.xlu0 %v828, 104
          %v832 = vpop.permute.xlu0 %831
          %v833 = vsel %vm594, %v832, 0
          %835 = vmatprep.subr.mxu0 0.0
          %836 = vmatpush1.msra.mxu0 %v829
          %837 = vmatprep.subr.mxu0 0.0
          %838 = vmatpush1.msra.mxu0 0.0
          %839 = vmatprep.subr.mxu0 0.0
          %840 = vmatpush1.msra.mxu0 0.0
          %841 = vmatprep.subr.mxu0 0.0
          %842 = vmatpush1.msra.mxu0 0.0
          %843 = vmatprep.subr.mxu0 0.0
          %844 = vmatpush1.msra.mxu0 0.0
          %845 = vmatprep.subr.mxu0 0.0
          %846 = vmatpush1.msra.mxu0 0.0
          %847 = vmatprep.subr.mxu0 0.0
          %848 = vmatpush1.msra.mxu0 0.0
          %849 = vmatprep.subr.mxu0 0.0
          %850 = vmatpush1.msra.mxu0 0.0
          %851 = vmatprep.subr.mxu0 0.0
          %852 = vmatpush1.msra.mxu0 0.0
          %853 = vmatprep.subr.mxu0 0.0
          %854 = vmatpush1.msra.mxu0 0.0
          %855 = vmatprep.subr.mxu0 0.0
          %856 = vmatpush1.msra.mxu0 0.0
          %857 = vmatprep.subr.mxu0 0.0
          %858 = vmatpush1.msra.mxu0 0.0
          %859 = vmatprep.subr.mxu0 0.0
          %860 = vmatpush1.msra.mxu0 0.0
          %861 = vmatprep.subr.mxu0 0.0
          %862 = vmatpush1.msra.mxu0 0.0
          %863 = vmatprep.subr.mxu0 0.0
          %864 = vmatpush1.msra.mxu0 0.0
          %865 = vmatprep.subr.mxu0 0.0
          %866 = vmatpush1.msra.mxu0 0.0
          %867 = vmatprep.subr.mxu0 0.0
          %868 = vmatpush1.msra.mxu0 0.0
          %869 = vmatprep.subr.mxu0 0.0
          %870 = vmatpush1.msra.mxu0 0.0
          %871 = vmatprep.subr.mxu0 0.0
          %872 = vmatpush1.msra.mxu0 0.0
          %873 = vmatprep.subr.mxu0 0.0
          %874 = vmatpush1.msra.mxu0 0.0
          %875 = vmatprep.subr.mxu0 0.0
          %876 = vmatpush1.msra.mxu0 0.0
          %877 = vmatprep.subr.mxu0 0.0
          %878 = vmatpush1.msra.mxu0 0.0
          %879 = vmatprep.subr.mxu0 0.0
          %880 = vmatpush1.msra.mxu0 0.0
          %881 = vmatprep.subr.mxu0 0.0
          %882 = vmatpush1.msra.mxu0 0.0
          %883 = vmatprep.subr.mxu0 0.0
          %884 = vmatpush1.msra.mxu0 0.0
          %885 = vmatprep.subr.mxu0 0.0
          %886 = vmatpush1.msra.mxu0 0.0
          %887 = vmatprep.subr.mxu0 0.0
          %888 = vmatpush1.msra.mxu0 0.0
          %889 = vmatprep.subr.mxu0 0.0
          %890 = vmatpush1.msra.mxu0 0.0
          %891 = vmatprep.subr.mxu0 0.0
          %892 = vmatpush1.msra.mxu0 0.0
          %893 = vmatprep.subr.mxu0 0.0
          %894 = vmatpush1.msra.mxu0 0.0
          %895 = vmatprep.subr.mxu0 0.0
          %896 = vmatpush1.msra.mxu0 0.0
          %897 = vmatprep.subr.mxu0 0.0
          %898 = vmatpush1.msra.mxu0 0.0
          %899 = vmatprep.mubr.f32.mxu0 0.0
          %900 = vmatmul.mubr.f32.gmra.mrb[0].mxu0 %v833
          %v901 = vpop.f32.mrb[0].mxu0
          %v902 = vadd.f32 0.0, %v901
          %v903 = vpop.f32.mrb[0].mxu0
          %904 = vdwg.mxu0
          %s905 = scalar_lea.vmem [#allocation3], 24
          %906 = vst.msk [vmem:[%s905] sm:$0xff] %vm668, %v902
          %v907 = vld [vmem:[#allocation2] sm:$0xff]
          %v908 = vld [vmem:[%s2] sm:$0xff]
          %910 = vrot.lane.b32.xlu0 %v907, 96
          %v911 = vpop.permute.xlu0 %910
          %v912 = vsel %vm594, %v911, 0
          %914 = vmatprep.subr.mxu0 0.0
          %915 = vmatpush1.msra.mxu0 %v908
          %916 = vmatprep.subr.mxu0 0.0
          %917 = vmatpush1.msra.mxu0 0.0
          %918 = vmatprep.subr.mxu0 0.0
          %919 = vmatpush1.msra.mxu0 0.0
          %920 = vmatprep.subr.mxu0 0.0
          %921 = vmatpush1.msra.mxu0 0.0
          %922 = vmatprep.subr.mxu0 0.0
          %923 = vmatpush1.msra.mxu0 0.0
          %924 = vmatprep.subr.mxu0 0.0
          %925 = vmatpush1.msra.mxu0 0.0
          %926 = vmatprep.subr.mxu0 0.0
          %927 = vmatpush1.msra.mxu0 0.0
          %928 = vmatprep.subr.mxu0 0.0
          %929 = vmatpush1.msra.mxu0 0.0
          %930 = vmatprep.subr.mxu0 0.0
          %931 = vmatpush1.msra.mxu0 0.0
          %932 = vmatprep.subr.mxu0 0.0
          %933 = vmatpush1.msra.mxu0 0.0
          %934 = vmatprep.subr.mxu0 0.0
          %935 = vmatpush1.msra.mxu0 0.0
          %936 = vmatprep.subr.mxu0 0.0
          %937 = vmatpush1.msra.mxu0 0.0
          %938 = vmatprep.subr.mxu0 0.0
          %939 = vmatpush1.msra.mxu0 0.0
          %940 = vmatprep.subr.mxu0 0.0
          %941 = vmatpush1.msra.mxu0 0.0
          %942 = vmatprep.subr.mxu0 0.0
          %943 = vmatpush1.msra.mxu0 0.0
          %944 = vmatprep.subr.mxu0 0.0
          %945 = vmatpush1.msra.mxu0 0.0
          %946 = vmatprep.subr.mxu0 0.0
          %947 = vmatpush1.msra.mxu0 0.0
          %948 = vmatprep.subr.mxu0 0.0
          %949 = vmatpush1.msra.mxu0 0.0
          %950 = vmatprep.subr.mxu0 0.0
          %951 = vmatpush1.msra.mxu0 0.0
          %952 = vmatprep.subr.mxu0 0.0
          %953 = vmatpush1.msra.mxu0 0.0
          %954 = vmatprep.subr.mxu0 0.0
          %955 = vmatpush1.msra.mxu0 0.0
          %956 = vmatprep.subr.mxu0 0.0
          %957 = vmatpush1.msra.mxu0 0.0
          %958 = vmatprep.subr.mxu0 0.0
          %959 = vmatpush1.msra.mxu0 0.0
          %960 = vmatprep.subr.mxu0 0.0
          %961 = vmatpush1.msra.mxu0 0.0
          %962 = vmatprep.subr.mxu0 0.0
          %963 = vmatpush1.msra.mxu0 0.0
          %964 = vmatprep.subr.mxu0 0.0
          %965 = vmatpush1.msra.mxu0 0.0
          %966 = vmatprep.subr.mxu0 0.0
          %967 = vmatpush1.msra.mxu0 0.0
          %968 = vmatprep.subr.mxu0 0.0
          %969 = vmatpush1.msra.mxu0 0.0
          %970 = vmatprep.subr.mxu0 0.0
          %971 = vmatpush1.msra.mxu0 0.0
          %972 = vmatprep.subr.mxu0 0.0
          %973 = vmatpush1.msra.mxu0 0.0
          %974 = vmatprep.subr.mxu0 0.0
          %975 = vmatpush1.msra.mxu0 0.0
          %976 = vmatprep.subr.mxu0 0.0
          %977 = vmatpush1.msra.mxu0 0.0
          %978 = vmatprep.mubr.f32.mxu0 0.0
          %979 = vmatmul.mubr.f32.gmra.mrb[0].mxu0 %v912
          %v980 = vpop.f32.mrb[0].mxu0
          %v981 = vadd.f32 0.0, %v980
          %v982 = vpop.f32.mrb[0].mxu0
          %983 = vdwg.mxu0
          %s984 = scalar_lea.vmem [#allocation3], 32
          %985 = vst.msk [vmem:[%s984] sm:$0xff] %vm668, %v981
          %v986 = vld [vmem:[#allocation2] sm:$0xff]
          %v987 = vld [vmem:[%s2] sm:$0xff]
          %989 = vrot.lane.b32.xlu0 %v986, 88
          %v990 = vpop.permute.xlu0 %989
          %v991 = vsel %vm594, %v990, 0
          %993 = vmatprep.subr.mxu0 0.0
          %994 = vmatpush1.msra.mxu0 %v987
          %995 = vmatprep.subr.mxu0 0.0
          %996 = vmatpush1.msra.mxu0 0.0
          %997 = vmatprep.subr.mxu0 0.0
          %998 = vmatpush1.msra.mxu0 0.0
          %999 = vmatprep.subr.mxu0 0.0
          %1000 = vmatpush1.msra.mxu0 0.0
          %1001 = vmatprep.subr.mxu0 0.0
          %1002 = vmatpush1.msra.mxu0 0.0
          %1003 = vmatprep.subr.mxu0 0.0
          %1004 = vmatpush1.msra.mxu0 0.0
          %1005 = vmatprep.subr.mxu0 0.0
          %1006 = vmatpush1.msra.mxu0 0.0
          %1007 = vmatprep.subr.mxu0 0.0
          %1008 = vmatpush1.msra.mxu0 0.0
          %1009 = vmatprep.subr.mxu0 0.0
          %1010 = vmatpush1.msra.mxu0 0.0
          %1011 = vmatprep.subr.mxu0 0.0
          %1012 = vmatpush1.msra.mxu0 0.0
          %1013 = vmatprep.subr.mxu0 0.0
          %1014 = vmatpush1.msra.mxu0 0.0
          %1015 = vmatprep.subr.mxu0 0.0
          %1016 = vmatpush1.msra.mxu0 0.0
          %1017 = vmatprep.subr.mxu0 0.0
          %1018 = vmatpush1.msra.mxu0 0.0
          %1019 = vmatprep.subr.mxu0 0.0
          %1020 = vmatpush1.msra.mxu0 0.0
          %1021 = vmatprep.subr.mxu0 0.0
          %1022 = vmatpush1.msra.mxu0 0.0
          %1023 = vmatprep.subr.mxu0 0.0
          %1024 = vmatpush1.msra.mxu0 0.0
          %1025 = vmatprep.subr.mxu0 0.0
          %1026 = vmatpush1.msra.mxu0 0.0
          %1027 = vmatprep.subr.mxu0 0.0
          %1028 = vmatpush1.msra.mxu0 0.0
          %1029 = vmatprep.subr.mxu0 0.0
          %1030 = vmatpush1.msra.mxu0 0.0
          %1031 = vmatprep.subr.mxu0 0.0
          %1032 = vmatpush1.msra.mxu0 0.0
          %1033 = vmatprep.subr.mxu0 0.0
          %1034 = vmatpush1.msra.mxu0 0.0
          %1035 = vmatprep.subr.mxu0 0.0
          %1036 = vmatpush1.msra.mxu0 0.0
          %1037 = vmatprep.subr.mxu0 0.0
          %1038 = vmatpush1.msra.mxu0 0.0
          %1039 = vmatprep.subr.mxu0 0.0
          %1040 = vmatpush1.msra.mxu0 0.0
          %1041 = vmatprep.subr.mxu0 0.0
          %1042 = vmatpush1.msra.mxu0 0.0
          %1043 = vmatprep.subr.mxu0 0.0
          %1044 = vmatpush1.msra.mxu0 0.0
          %1045 = vmatprep.subr.mxu0 0.0
          %1046 = vmatpush1.msra.mxu0 0.0
          %1047 = vmatprep.subr.mxu0 0.0
          %1048 = vmatpush1.msra.mxu0 0.0
          %1049 = vmatprep.subr.mxu0 0.0
          %1050 = vmatpush1.msra.mxu0 0.0
          %1051 = vmatprep.subr.mxu0 0.0
          %1052 = vmatpush1.msra.mxu0 0.0
          %1053 = vmatprep.subr.mxu0 0.0
          %1054 = vmatpush1.msra.mxu0 0.0
          %1055 = vmatprep.subr.mxu0 0.0
          %1056 = vmatpush1.msra.mxu0 0.0
          %1057 = vmatprep.mubr.f32.mxu0 0.0
          %1058 = vmatmul.mubr.f32.gmra.mrb[0].mxu0 %v991
          %v1059 = vpop.f32.mrb[0].mxu0
          %v1060 = vadd.f32 0.0, %v1059
          %v1061 = vpop.f32.mrb[0].mxu0
          %1062 = vdwg.mxu0
          %s1063 = scalar_lea.vmem [#allocation3], 40
          %1064 = vst.msk [vmem:[%s1063] sm:$0xff] %vm668, %v1060
          %v1065 = vld [vmem:[#allocation2] sm:$0xff]
          %v1066 = vld [vmem:[%s2] sm:$0xff]
          %1068 = vrot.lane.b32.xlu0 %v1065, 80
          %v1069 = vpop.permute.xlu0 %1068
          %v1070 = vsel %vm594, %v1069, 0
          %1072 = vmatprep.subr.mxu0 0.0
          %1073 = vmatpush1.msra.mxu0 %v1066
          %1074 = vmatprep.subr.mxu0 0.0
          %1075 = vmatpush1.msra.mxu0 0.0
          %1076 = vmatprep.subr.mxu0 0.0
          %1077 = vmatpush1.msra.mxu0 0.0
          %1078 = vmatprep.subr.mxu0 0.0
          %1079 = vmatpush1.msra.mxu0 0.0
          %1080 = vmatprep.subr.mxu0 0.0
          %1081 = vmatpush1.msra.mxu0 0.0
          %1082 = vmatprep.subr.mxu0 0.0
          %1083 = vmatpush1.msra.mxu0 0.0
          %1084 = vmatprep.subr.mxu0 0.0
          %1085 = vmatpush1.msra.mxu0 0.0
          %1086 = vmatprep.subr.mxu0 0.0
          %1087 = vmatpush1.msra.mxu0 0.0
          %1088 = vmatprep.subr.mxu0 0.0
          %1089 = vmatpush1.msra.mxu0 0.0
          %1090 = vmatprep.subr.mxu0 0.0
          %1091 = vmatpush1.msra.mxu0 0.0
          %1092 = vmatprep.subr.mxu0 0.0
          %1093 = vmatpush1.msra.mxu0 0.0
          %1094 = vmatprep.subr.mxu0 0.0
          %1095 = vmatpush1.msra.mxu0 0.0
          %1096 = vmatprep.subr.mxu0 0.0
          %1097 = vmatpush1.msra.mxu0 0.0
          %1098 = vmatprep.subr.mxu0 0.0
          %1099 = vmatpush1.msra.mxu0 0.0
          %1100 = vmatprep.subr.mxu0 0.0
          %1101 = vmatpush1.msra.mxu0 0.0
          %1102 = vmatprep.subr.mxu0 0.0
          %1103 = vmatpush1.msra.mxu0 0.0
          %1104 = vmatprep.subr.mxu0 0.0
          %1105 = vmatpush1.msra.mxu0 0.0
          %1106 = vmatprep.subr.mxu0 0.0
          %1107 = vmatpush1.msra.mxu0 0.0
          %1108 = vmatprep.subr.mxu0 0.0
          %1109 = vmatpush1.msra.mxu0 0.0
          %1110 = vmatprep.subr.mxu0 0.0
          %1111 = vmatpush1.msra.mxu0 0.0
          %1112 = vmatprep.subr.mxu0 0.0
          %1113 = vmatpush1.msra.mxu0 0.0
          %1114 = vmatprep.subr.mxu0 0.0
          %1115 = vmatpush1.msra.mxu0 0.0
          %1116 = vmatprep.subr.mxu0 0.0
          %1117 = vmatpush1.msra.mxu0 0.0
          %1118 = vmatprep.subr.mxu0 0.0
          %1119 = vmatpush1.msra.mxu0 0.0
          %1120 = vmatprep.subr.mxu0 0.0
          %1121 = vmatpush1.msra.mxu0 0.0
          %1122 = vmatprep.subr.mxu0 0.0
          %1123 = vmatpush1.msra.mxu0 0.0
          %1124 = vmatprep.subr.mxu0 0.0
          %1125 = vmatpush1.msra.mxu0 0.0
          %1126 = vmatprep.subr.mxu0 0.0
          %1127 = vmatpush1.msra.mxu0 0.0
          %1128 = vmatprep.subr.mxu0 0.0
          %1129 = vmatpush1.msra.mxu0 0.0
          %1130 = vmatprep.subr.mxu0 0.0
          %1131 = vmatpush1.msra.mxu0 0.0
          %1132 = vmatprep.subr.mxu0 0.0
          %1133 = vmatpush1.msra.mxu0 0.0
          %1134 = vmatprep.subr.mxu0 0.0
          %1135 = vmatpush1.msra.mxu0 0.0
          %1136 = vmatprep.mubr.f32.mxu0 0.0
          %1137 = vmatmul.mubr.f32.gmra.mrb[0].mxu0 %v1070
          %v1138 = vpop.f32.mrb[0].mxu0
          %v1139 = vadd.f32 0.0, %v1138
          %v1140 = vpop.f32.mrb[0].mxu0
          %1141 = vdwg.mxu0
          %s1142 = scalar_lea.vmem [#allocation3], 48
          %1143 = vst.msk [vmem:[%s1142] sm:$0xff] %vm668, %v1139
          %v1144 = vld [vmem:[#allocation2] sm:$0xff]
          %v1145 = vld [vmem:[%s2] sm:$0xff]
          %1147 = vrot.lane.b32.xlu0 %v1144, 72
          %v1148 = vpop.permute.xlu0 %1147
          %v1149 = vsel %vm594, %v1148, 0
          %1151 = vmatprep.subr.mxu0 0.0
          %1152 = vmatpush1.msra.mxu0 %v1145
          %1153 = vmatprep.subr.mxu0 0.0
          %1154 = vmatpush1.msra.mxu0 0.0
          %1155 = vmatprep.subr.mxu0 0.0
          %1156 = vmatpush1.msra.mxu0 0.0
          %1157 = vmatprep.subr.mxu0 0.0
          %1158 = vmatpush1.msra.mxu0 0.0
          %1159 = vmatprep.subr.mxu0 0.0
          %1160 = vmatpush1.msra.mxu0 0.0
          %1161 = vmatprep.subr.mxu0 0.0
          %1162 = vmatpush1.msra.mxu0 0.0
          %1163 = vmatprep.subr.mxu0 0.0
          %1164 = vmatpush1.msra.mxu0 0.0
          %1165 = vmatprep.subr.mxu0 0.0
          %1166 = vmatpush1.msra.mxu0 0.0
          %1167 = vmatprep.subr.mxu0 0.0
          %1168 = vmatpush1.msra.mxu0 0.0
          %1169 = vmatprep.subr.mxu0 0.0
          %1170 = vmatpush1.msra.mxu0 0.0
          %1171 = vmatprep.subr.mxu0 0.0
          %1172 = vmatpush1.msra.mxu0 0.0
          %1173 = vmatprep.subr.mxu0 0.0
          %1174 = vmatpush1.msra.mxu0 0.0
          %1175 = vmatprep.subr.mxu0 0.0
          %1176 = vmatpush1.msra.mxu0 0.0
          %1177 = vmatprep.subr.mxu0 0.0
          %1178 = vmatpush1.msra.mxu0 0.0
          %1179 = vmatprep.subr.mxu0 0.0
          %1180 = vmatpush1.msra.mxu0 0.0
          %1181 = vmatprep.subr.mxu0 0.0
          %1182 = vmatpush1.msra.mxu0 0.0
          %1183 = vmatprep.subr.mxu0 0.0
          %1184 = vmatpush1.msra.mxu0 0.0
          %1185 = vmatprep.subr.mxu0 0.0
          %1186 = vmatpush1.msra.mxu0 0.0
          %1187 = vmatprep.subr.mxu0 0.0
          %1188 = vmatpush1.msra.mxu0 0.0
          %1189 = vmatprep.subr.mxu0 0.0
          %1190 = vmatpush1.msra.mxu0 0.0
          %1191 = vmatprep.subr.mxu0 0.0
          %1192 = vmatpush1.msra.mxu0 0.0
          %1193 = vmatprep.subr.mxu0 0.0
          %1194 = vmatpush1.msra.mxu0 0.0
          %1195 = vmatprep.subr.mxu0 0.0
          %1196 = vmatpush1.msra.mxu0 0.0
          %1197 = vmatprep.subr.mxu0 0.0
          %1198 = vmatpush1.msra.mxu0 0.0
          %1199 = vmatprep.subr.mxu0 0.0
          %1200 = vmatpush1.msra.mxu0 0.0
          %1201 = vmatprep.subr.mxu0 0.0
          %1202 = vmatpush1.msra.mxu0 0.0
          %1203 = vmatprep.subr.mxu0 0.0
          %1204 = vmatpush1.msra.mxu0 0.0
          %1205 = vmatprep.subr.mxu0 0.0
          %1206 = vmatpush1.msra.mxu0 0.0
          %1207 = vmatprep.subr.mxu0 0.0
          %1208 = vmatpush1.msra.mxu0 0.0
          %1209 = vmatprep.subr.mxu0 0.0
          %1210 = vmatpush1.msra.mxu0 0.0
          %1211 = vmatprep.subr.mxu0 0.0
          %1212 = vmatpush1.msra.mxu0 0.0
          %1213 = vmatprep.subr.mxu0 0.0
          %1214 = vmatpush1.msra.mxu0 0.0
          %1215 = vmatprep.mubr.f32.mxu0 0.0
          %1216 = vmatmul.mubr.f32.gmra.mrb[0].mxu0 %v1149
          %v1217 = vpop.f32.mrb[0].mxu0
          %v1218 = vadd.f32 0.0, %v1217
          %v1219 = vpop.f32.mrb[0].mxu0
          %1220 = vdwg.mxu0
          %s1221 = scalar_lea.vmem [#allocation3], 56
          %1222 = vst.msk [vmem:[%s1221] sm:$0xff] %vm668, %v1218
        $region84: #{tpu_custom_call.1} parent=67 // pred_fallthru
          _
        %v1223 = vld [vmem:[%s497] sm:$0xff]
        %v1224 = vld [vmem:[%s8] sm:$0xff]
        %v1225 = vld [vmem:[%s9] sm:$0xff]
        %1227 = vset.pattern.permute.xlu0 0
        %1228 = vperm.xlu0 %1227, %v1225
        %v1229 = vpop.permute.xlu0 %1228
        %v1232 = vcombine.high %v1223, %v1223
        %vm1233 = vcmask 31744
        %v1235 = vsel %vm1233, %v1224, 0
        %vm1237 = vcmask 1043456
        %v1238 = vsel %vm1237, %v1223, 0
        %v1240 = vsel %vm1237, %v1232, 0
        %1242 = vmatprep.subr.mxu0 %v1240
        %1243 = vmatpush1.msra.mxu0 %v1238
        %1244 = vmatprep.subr.mxu0 0.0
        %1245 = vmatpush1.msra.mxu0 0.0
        %1246 = vmatprep.subr.mxu0 0.0
        %1247 = vmatpush1.msra.mxu0 0.0
        %1248 = vmatprep.subr.mxu0 0.0
        %1249 = vmatpush1.msra.mxu0 0.0
        %1250 = vmatprep.subr.mxu0 0.0
        %1251 = vmatpush1.msra.mxu0 0.0
        %1252 = vmatprep.subr.mxu0 0.0
        %1253 = vmatpush1.msra.mxu0 0.0
        %1254 = vmatprep.subr.mxu0 0.0
        %1255 = vmatpush1.msra.mxu0 0.0
        %1256 = vmatprep.subr.mxu0 0.0
        %1257 = vmatpush1.msra.mxu0 0.0
        %1258 = vmatprep.subr.mxu0 0.0
        %1259 = vmatpush1.msra.mxu0 0.0
        %1260 = vmatprep.subr.mxu0 0.0
        %1261 = vmatpush1.msra.mxu0 0.0
        %1262 = vmatprep.subr.mxu0 0.0
        %1263 = vmatpush1.msra.mxu0 0.0
        %1264 = vmatprep.subr.mxu0 0.0
        %1265 = vmatpush1.msra.mxu0 0.0
        %1266 = vmatprep.subr.mxu0 0.0
        %1267 = vmatpush1.msra.mxu0 0.0
        %1268 = vmatprep.subr.mxu0 0.0
        %1269 = vmatpush1.msra.mxu0 0.0
        %1270 = vmatprep.subr.mxu0 0.0
        %1271 = vmatpush1.msra.mxu0 0.0
        %1272 = vmatprep.subr.mxu0 0.0
        %1273 = vmatpush1.msra.mxu0 0.0
        %1274 = vmatprep.subr.mxu0 0.0
        %1275 = vmatpush1.msra.mxu0 0.0
        %1276 = vmatprep.subr.mxu0 0.0
        %1277 = vmatpush1.msra.mxu0 0.0
        %1278 = vmatprep.subr.mxu0 0.0
        %1279 = vmatpush1.msra.mxu0 0.0
        %1280 = vmatprep.subr.mxu0 0.0
        %1281 = vmatpush1.msra.mxu0 0.0
        %1282 = vmatprep.subr.mxu0 0.0
        %1283 = vmatpush1.msra.mxu0 0.0
        %1284 = vmatprep.subr.mxu0 0.0
        %1285 = vmatpush1.msra.mxu0 0.0
        %1286 = vmatprep.subr.mxu0 0.0
        %1287 = vmatpush1.msra.mxu0 0.0
        %1288 = vmatprep.subr.mxu0 0.0
        %1289 = vmatpush1.msra.mxu0 0.0
        %1290 = vmatprep.subr.mxu0 0.0
        %1291 = vmatpush1.msra.mxu0 0.0
        %1292 = vmatprep.subr.mxu0 0.0
        %1293 = vmatpush1.msra.mxu0 0.0
        %1294 = vmatprep.subr.mxu0 0.0
        %1295 = vmatpush1.msra.mxu0 0.0
        %1296 = vmatprep.subr.mxu0 0.0
        %1297 = vmatpush1.msra.mxu0 0.0
        %1298 = vmatprep.subr.mxu0 0.0
        %1299 = vmatpush1.msra.mxu0 0.0
        %1300 = vmatprep.subr.mxu0 0.0
        %1301 = vmatpush1.msra.mxu0 0.0
        %1302 = vmatprep.subr.mxu0 0.0
        %1303 = vmatpush1.msra.mxu0 0.0
        %1304 = vmatprep.subr.mxu0 0.0
        %1305 = vmatpush1.msra.mxu0 0.0
        %1306 = vmatprep.mubr.f32.mxu0 0.0
        %1307 = vmatmul.mubr.f32.gmra.mrb[0].mxu0 %v1235
        %v1308 = vpop.f32.mrb[0].mxu0
        %v1309 = vadd.f32 %v1229, %v1308
        %v1310 = vpop.f32.mrb[0].mxu0
        %v1311 = vadd.f32 %v1229, %v1310
        %1312 = vdwg.mxu0
        %s1313 = smul.u32 %s34, 16
        %s1314 = sld [smem:[#allocation6 + %s1313]]
        %s1315 = sld [smem:[#allocation9 + %s1313]]
        %s1316 = sld [smem:[#allocation11 + %s1313]]
        %s1317 = smul.u32 %s1314, 8
        %s1318 = scalar_lea.vmem [#allocation3], %s1317
        %v1319 = vld [vmem:[%s1318] sm:$0xff]
        %s1320 = smul.u32 %s1315, 8
        %s1321 = scalar_lea.vmem [#allocation3], %s1320
        %v1322 = vld [vmem:[%s1321] sm:$0xff]
        %v1323 = vsub.f32 %v1322, %v1319
        %v1324 = vstv %s1316
        %v1325 = vmul.f32 %v1324, %v1323
        %v1326 = vadd.f32 %v1319, %v1325
        %vm1327 = vcmask 130048
        %1328 = vst.msk [vmem:[#allocation4] sm:$0xff] %vm1327, %v1326
        %s1329 = sadd.s32 %s1313, 1
        %s1330 = sld [smem:[#allocation6 + %s1329]]
        %s1331 = sld [smem:[#allocation9 + %s1329]]
        %s1332 = sld [smem:[#allocation11 + %s1329]]
        %s1333 = smul.u32 %s1330, 8
        %s1334 = scalar_lea.vmem [#allocation3], %s1333
        %v1335 = vld [vmem:[%s1334] sm:$0xff]
        %s1336 = smul.u32 %s1331, 8
        %s1337 = scalar_lea.vmem [#allocation3], %s1336
        %v1338 = vld [vmem:[%s1337] sm:$0xff]
        %v1339 = vsub.f32 %v1338, %v1335
        %v1340 = vstv %s1332
        %v1341 = vmul.f32 %v1340, %v1339
        %v1342 = vadd.f32 %v1335, %v1341
        %1344 = vrot.lane.b32.xlu0 %v1342, 16
        %v1345 = vpop.permute.xlu0 %1344
        %vm1347 = vcmask 261248
        %1348 = vst.msk [vmem:[#allocation4] sm:$0xff] %vm1347, %v1345
        %s1349 = sadd.s32 %s1313, 2
        %s1350 = sld [smem:[#allocation6 + %s1349]]
        %s1351 = sld [smem:[#allocation9 + %s1349]]
        %s1352 = sld [smem:[#allocation11 + %s1349]]
        %s1353 = smul.u32 %s1350, 8
        %s1354 = scalar_lea.vmem [#allocation3], %s1353
        %v1355 = vld [vmem:[%s1354] sm:$0xff]
        %s1356 = smul.u32 %s1351, 8
        %s1357 = scalar_lea.vmem [#allocation3], %s1356
        %v1358 = vld [vmem:[%s1357] sm:$0xff]
        %v1359 = vsub.f32 %v1358, %v1355
        %v1360 = vstv %s1352
        %v1361 = vmul.f32 %v1360, %v1359
        %v1362 = vadd.f32 %v1355, %v1361
        %1364 = vrot.lane.b32.xlu0 %v1362, 32
        %v1365 = vpop.permute.xlu0 %1364
        %vm1367 = vcmask 392448
        %1368 = vst.msk [vmem:[#allocation4] sm:$0xff] %vm1367, %v1365
        %s1369 = sadd.s32 %s1313, 3
        %s1370 = sld [smem:[#allocation6 + %s1369]]
        %s1371 = sld [smem:[#allocation9 + %s1369]]
        %s1372 = sld [smem:[#allocation11 + %s1369]]
        %s1373 = smul.u32 %s1370, 8
        %s1374 = scalar_lea.vmem [#allocation3], %s1373
        %v1375 = vld [vmem:[%s1374] sm:$0xff]
        %s1376 = smul.u32 %s1371, 8
        %s1377 = scalar_lea.vmem [#allocation3], %s1376
        %v1378 = vld [vmem:[%s1377] sm:$0xff]
        %v1379 = vsub.f32 %v1378, %v1375
        %v1380 = vstv %s1372
        %v1381 = vmul.f32 %v1380, %v1379
        %v1382 = vadd.f32 %v1375, %v1381
        %1384 = vrot.lane.b32.xlu0 %v1382, 48
        %v1385 = vpop.permute.xlu0 %1384
        %vm1387 = vcmask 523648
        %1388 = vst.msk [vmem:[#allocation4] sm:$0xff] %vm1387, %v1385
        %s1389 = sadd.s32 %s1313, 4
        %s1390 = sld [smem:[#allocation6 + %s1389]]
        %s1391 = sld [smem:[#allocation9 + %s1389]]
        %s1392 = sld [smem:[#allocation11 + %s1389]]
        %s1393 = smul.u32 %s1390, 8
        %s1394 = scalar_lea.vmem [#allocation3], %s1393
        %v1395 = vld [vmem:[%s1394] sm:$0xff]
        %s1396 = smul.u32 %s1391, 8
        %s1397 = scalar_lea.vmem [#allocation3], %s1396
        %v1398 = vld [vmem:[%s1397] sm:$0xff]
        %v1399 = vsub.f32 %v1398, %v1395
        %v1400 = vstv %s1392
        %v1401 = vmul.f32 %v1400, %v1399
        %v1402 = vadd.f32 %v1395, %v1401
        %1404 = vrot.lane.b32.xlu0 %v1402, 64
        %v1405 = vpop.permute.xlu0 %1404
        %vm1407 = vcmask 654848
        %1408 = vst.msk [vmem:[#allocation4] sm:$0xff] %vm1407, %v1405
        %s1409 = sadd.s32 %s1313, 5
        %s1410 = sld [smem:[#allocation6 + %s1409]]
        %s1411 = sld [smem:[#allocation9 + %s1409]]
        %s1412 = sld [smem:[#allocation11 + %s1409]]
        %s1413 = smul.u32 %s1410, 8
        %s1414 = scalar_lea.vmem [#allocation3], %s1413
        %v1415 = vld [vmem:[%s1414] sm:$0xff]
        %s1416 = smul.u32 %s1411, 8
        %s1417 = scalar_lea.vmem [#allocation3], %s1416
        %v1418 = vld [vmem:[%s1417] sm:$0xff]
        %v1419 = vsub.f32 %v1418, %v1415
        %v1420 = vstv %s1412
        %v1421 = vmul.f32 %v1420, %v1419
        %v1422 = vadd.f32 %v1415, %v1421
        %1424 = vrot.lane.b32.xlu0 %v1422, 80
        %v1425 = vpop.permute.xlu0 %1424
        %vm1427 = vcmask 786048
        %1428 = vst.msk [vmem:[#allocation4] sm:$0xff] %vm1427, %v1425
        %s1429 = sadd.s32 %s1313, 6
        %s1430 = sld [smem:[#allocation6 + %s1429]]
        %s1431 = sld [smem:[#allocation9 + %s1429]]
        %s1432 = sld [smem:[#allocation11 + %s1429]]
        %s1433 = smul.u32 %s1430, 8
        %s1434 = scalar_lea.vmem [#allocation3], %s1433
        %v1435 = vld [vmem:[%s1434] sm:$0xff]
        %s1436 = smul.u32 %s1431, 8
        %s1437 = scalar_lea.vmem [#allocation3], %s1436
        %v1438 = vld [vmem:[%s1437] sm:$0xff]
        %v1439 = vsub.f32 %v1438, %v1435
        %v1440 = vstv %s1432
        %v1441 = vmul.f32 %v1440, %v1439
        %v1442 = vadd.f32 %v1435, %v1441
        %1444 = vrot.lane.b32.xlu0 %v1442, 96
        %v1445 = vpop.permute.xlu0 %1444
        %vm1447 = vcmask 917248
        %1448 = vst.msk [vmem:[#allocation4] sm:$0xff] %vm1447, %v1445
        %s1449 = sadd.s32 %s1313, 7
        %s1450 = sld [smem:[#allocation6 + %s1449]]
        %s1451 = sld [smem:[#allocation9 + %s1449]]
        %s1452 = sld [smem:[#allocation11 + %s1449]]
        %s1453 = smul.u32 %s1450, 8
        %s1454 = scalar_lea.vmem [#allocation3], %s1453
        %v1455 = vld [vmem:[%s1454] sm:$0xff]
        %s1456 = smul.u32 %s1451, 8
        %s1457 = scalar_lea.vmem [#allocation3], %s1456
        %v1458 = vld [vmem:[%s1457] sm:$0xff]
        %v1459 = vsub.f32 %v1458, %v1455
        %v1460 = vstv %s1452
        %v1461 = vmul.f32 %v1460, %v1459
        %v1462 = vadd.f32 %v1455, %v1461
        %1464 = vrot.lane.b32.xlu0 %v1462, 112
        %v1465 = vpop.permute.xlu0 %1464
        %vm1467 = vcmask 1048448
        %1468 = vst.msk [vmem:[#allocation4] sm:$0xff] %vm1467, %v1465
        %s1469 = sadd.s32 %s1313, 8
        %s1470 = sld [smem:[#allocation6 + %s1469]]
        %s1471 = sld [smem:[#allocation9 + %s1469]]
        %s1472 = sld [smem:[#allocation11 + %s1469]]
        %s1473 = smul.u32 %s1470, 8
        %s1474 = scalar_lea.vmem [#allocation3], %s1473
        %v1475 = vld [vmem:[%s1474] sm:$0xff]
        %s1476 = smul.u32 %s1471, 8
        %s1477 = scalar_lea.vmem [#allocation3], %s1476
        %v1478 = vld [vmem:[%s1477] sm:$0xff]
        %v1479 = vsub.f32 %v1478, %v1475
        %v1480 = vstv %s1472
        %v1481 = vmul.f32 %v1480, %v1479
        %v1482 = vadd.f32 %v1475, %v1481
        %1483 = vst.msk [vmem:[#allocation4 + $0x8] sm:$0xff] %vm1327, %v1482
        %s1484 = sadd.s32 %s1313, 9
        %s1485 = sld [smem:[#allocation6 + %s1484]]
        %s1486 = sld [smem:[#allocation9 + %s1484]]
        %s1487 = sld [smem:[#allocation11 + %s1484]]
        %s1488 = smul.u32 %s1485, 8
        %s1489 = scalar_lea.vmem [#allocation3], %s1488
        %v1490 = vld [vmem:[%s1489] sm:$0xff]
        %s1491 = smul.u32 %s1486, 8
        %s1492 = scalar_lea.vmem [#allocation3], %s1491
        %v1493 = vld [vmem:[%s1492] sm:$0xff]
        %v1494 = vsub.f32 %v1493, %v1490
        %v1495 = vstv %s1487
        %v1496 = vmul.f32 %v1495, %v1494
        %v1497 = vadd.f32 %v1490, %v1496
        %1499 = vrot.lane.b32.xlu0 %v1497, 16
        %v1500 = vpop.permute.xlu0 %1499
        %1502 = vst.msk [vmem:[#allocation4 + $0x8] sm:$0xff] %vm1347, %v1500
        %s1503 = sadd.s32 %s1313, 10
        %s1504 = sld [smem:[#allocation6 + %s1503]]
        %s1505 = sld [smem:[#allocation9 + %s1503]]
        %s1506 = sld [smem:[#allocation11 + %s1503]]
        %s1507 = smul.u32 %s1504, 8
        %s1508 = scalar_lea.vmem [#allocation3], %s1507
        %v1509 = vld [vmem:[%s1508] sm:$0xff]
        %s1510 = smul.u32 %s1505, 8
        %s1511 = scalar_lea.vmem [#allocation3], %s1510
        %v1512 = vld [vmem:[%s1511] sm:$0xff]
        %v1513 = vsub.f32 %v1512, %v1509
        %v1514 = vstv %s1506
        %v1515 = vmul.f32 %v1514, %v1513
        %v1516 = vadd.f32 %v1509, %v1515
        %1518 = vrot.lane.b32.xlu0 %v1516, 32
        %v1519 = vpop.permute.xlu0 %1518
        %1521 = vst.msk [vmem:[#allocation4 + $0x8] sm:$0xff] %vm1367, %v1519
        %s1522 = sadd.s32 %s1313, 11
        %s1523 = sld [smem:[#allocation6 + %s1522]]
        %s1524 = sld [smem:[#allocation9 + %s1522]]
        %s1525 = sld [smem:[#allocation11 + %s1522]]
        %s1526 = smul.u32 %s1523, 8
        %s1527 = scalar_lea.vmem [#allocation3], %s1526
        %v1528 = vld [vmem:[%s1527] sm:$0xff]
        %s1529 = smul.u32 %s1524, 8
        %s1530 = scalar_lea.vmem [#allocation3], %s1529
        %v1531 = vld [vmem:[%s1530] sm:$0xff]
        %v1532 = vsub.f32 %v1531, %v1528
        %v1533 = vstv %s1525
        %v1534 = vmul.f32 %v1533, %v1532
        %v1535 = vadd.f32 %v1528, %v1534
        %1537 = vrot.lane.b32.xlu0 %v1535, 48
        %v1538 = vpop.permute.xlu0 %1537
        %1540 = vst.msk [vmem:[#allocation4 + $0x8] sm:$0xff] %vm1387, %v1538
        %s1541 = sadd.s32 %s1313, 12
        %s1542 = sld [smem:[#allocation6 + %s1541]]
        %s1543 = sld [smem:[#allocation9 + %s1541]]
        %s1544 = sld [smem:[#allocation11 + %s1541]]
        %s1545 = smul.u32 %s1542, 8
        %s1546 = scalar_lea.vmem [#allocation3], %s1545
        %v1547 = vld [vmem:[%s1546] sm:$0xff]
        %s1548 = smul.u32 %s1543, 8
        %s1549 = scalar_lea.vmem [#allocation3], %s1548
        %v1550 = vld [vmem:[%s1549] sm:$0xff]
        %v1551 = vsub.f32 %v1550, %v1547
        %v1552 = vstv %s1544
        %v1553 = vmul.f32 %v1552, %v1551
        %v1554 = vadd.f32 %v1547, %v1553
        %1556 = vrot.lane.b32.xlu0 %v1554, 64
        %v1557 = vpop.permute.xlu0 %1556
        %1559 = vst.msk [vmem:[#allocation4 + $0x8] sm:$0xff] %vm1407, %v1557
        %s1560 = sadd.s32 %s1313, 13
        %s1561 = sld [smem:[#allocation6 + %s1560]]
        %s1562 = sld [smem:[#allocation9 + %s1560]]
        %s1563 = sld [smem:[#allocation11 + %s1560]]
        %s1564 = smul.u32 %s1561, 8
        %s1565 = scalar_lea.vmem [#allocation3], %s1564
        %v1566 = vld [vmem:[%s1565] sm:$0xff]
        %s1567 = smul.u32 %s1562, 8
        %s1568 = scalar_lea.vmem [#allocation3], %s1567
        %v1569 = vld [vmem:[%s1568] sm:$0xff]
        %v1570 = vsub.f32 %v1569, %v1566
        %v1571 = vstv %s1563
        %v1572 = vmul.f32 %v1571, %v1570
        %v1573 = vadd.f32 %v1566, %v1572
        %1575 = vrot.lane.b32.xlu0 %v1573, 80
        %v1576 = vpop.permute.xlu0 %1575
        %1578 = vst.msk [vmem:[#allocation4 + $0x8] sm:$0xff] %vm1427, %v1576
        %s1579 = sadd.s32 %s1313, 14
        %s1580 = sld [smem:[#allocation6 + %s1579]]
        %s1581 = sld [smem:[#allocation9 + %s1579]]
        %s1582 = sld [smem:[#allocation11 + %s1579]]
        %s1583 = smul.u32 %s1580, 8
        %s1584 = scalar_lea.vmem [#allocation3], %s1583
        %v1585 = vld [vmem:[%s1584] sm:$0xff]
        %s1586 = smul.u32 %s1581, 8
        %s1587 = scalar_lea.vmem [#allocation3], %s1586
        %v1588 = vld [vmem:[%s1587] sm:$0xff]
        %v1589 = vsub.f32 %v1588, %v1585
        %v1590 = vstv %s1582
        %v1591 = vmul.f32 %v1590, %v1589
        %v1592 = vadd.f32 %v1585, %v1591
        %1594 = vrot.lane.b32.xlu0 %v1592, 96
        %v1595 = vpop.permute.xlu0 %1594
        %1597 = vst.msk [vmem:[#allocation4 + $0x8] sm:$0xff] %vm1447, %v1595
        %s1598 = sadd.s32 %s1313, 15
        %s1599 = sld [smem:[#allocation6 + %s1598]]
        %s1600 = sld [smem:[#allocation9 + %s1598]]
        %s1601 = sld [smem:[#allocation11 + %s1598]]
        %s1602 = smul.u32 %s1599, 8
        %s1603 = scalar_lea.vmem [#allocation3], %s1602
        %v1604 = vld [vmem:[%s1603] sm:$0xff]
        %s1605 = smul.u32 %s1600, 8
        %s1606 = scalar_lea.vmem [#allocation3], %s1605
        %v1607 = vld [vmem:[%s1606] sm:$0xff]
        %v1608 = vsub.f32 %v1607, %v1604
        %v1609 = vstv %s1601
        %v1610 = vmul.f32 %v1609, %v1608
        %v1611 = vadd.f32 %v1604, %v1610
        %1613 = vrot.lane.b32.xlu0 %v1611, 112
        %v1614 = vpop.permute.xlu0 %1613
        %1616 = vst.msk [vmem:[#allocation4 + $0x8] sm:$0xff] %vm1467, %v1614
        %v1617 = vld [vmem:[#allocation4] sm:$0xff]
        %v1618 = vld [vmem:[#allocation4 + $0x8] sm:$0xff]
        %v1619 = vadd.f32 %v1617, %v1309
        %v1620 = vadd.f32 %v1618, %v1311
        %v1621 = vmax.f32 %v1619, 0.0
        %v1622 = vmax.f32 %v1620, 0.0
        %v1623 = vld [vmem:[%s10] sm:$0xff]
        %1625 = vset.pattern.permute.xlu0 0
        %1626 = vperm.xlu0 %1625, %v1623
        %v1627 = vpop.permute.xlu0 %1626
        %v1629 = vmul.f32 %v1621, %v1627
        %v1630 = vmul.f32 %v1622, %v1627
        %v1631 = vrot.slane %v1629, 4
        %v1632 = vadd.f32 %v1629, %v1631
        %v1633 = vrot.slane %v1632, 2
        %v1634 = vadd.f32 %v1632, %v1633
        %v1635 = vrot.slane %v1634, 1
        %v1636 = vadd.f32 %v1634, %v1635
        %v1637 = vrot.slane %v1630, 4
        %v1638 = vadd.f32 %v1630, %v1637
        %v1639 = vrot.slane %v1638, 2
        %v1640 = vadd.f32 %v1638, %v1639
        %v1641 = vrot.slane %v1640, 1
        %v1642 = vadd.f32 %v1640, %v1641
        %s1643 = sld [smem:[#allocation5]]
        %v1644 = vstv %s1643
        %v1645 = vadd.f32 %v1636, %v1644
        %v1646 = vadd.f32 %v1642, %v1644
        %v1647 = vxor.u32 %v1645, 2147483648
        %v1648 = vxor.u32 %v1646, 2147483648
        %v1649 = vmul.f32 %v1647, 1.442695
        %v1650 = vpow.pop %v1649
        %v1651 = vmul.f32 %v1648, 1.442695
        %v1652 = vpow.pop %v1651
        %v1653 = vadd.f32 %v1650, 1.0
        %v1654 = vadd.f32 %v1652, 1.0
        %v1655 = vrcp.pop %v1653
        %v1656 = vmul.f32 1.0, %v1655
        %v1657 = vrcp.pop %v1654
        %v1658 = vmul.f32 1.0, %v1657
        %v1661 = vcombine.low %v1656, %v1658
        %v1663 = vmul.f32 %v1223, %v1661
        %1664 = vst [vmem:[%s484] sm:$0xff] %v1663
        %s1665 = sand.u32 %s315, 1
        %s1666 = scalar_lea.sflag [#allocation7], %s1665
        %s1667 = sand.u32 %s315, 1
        %s1668 = smul.addr %s1667, 8
        %s1669 = scalar_lea.vmem [#allocation12], %s1668
        // Predicated region
        $region85: #{tpu_custom_call.1} parent=67 // pred_check
          %p1670 = pneg %p325
        $region86: #{tpu_custom_call.1} parent=67 // pred_check_branch
          %1672 = sbr.rel (%p1670) target = $region88
        $region87: #{tpu_custom_call.1} parent=67 // pred_region
          %s1673 = smul.u32 2, %s34
          %s1675 = ssub.s32 128, 128
          %1676 = vsyncadd %s1666, %s1675
          %s1677 = smul.addr %s33, 2
          %s1678 = sadd.s32 %s1673, %s1677
          %s1679 = smul.addr %s1678, 64
          %s1680 = scalar_lea.hbm %s12, %s1679
          %s1682 = sshll.u32 %s1669, 4
          %s1683 = int_to_ptr.vmem [resolvable:$true] %s1682
          %1685 = dma.vmem_to_hbm [thread:$0]  %s1683, 128, %s1680, %s1666
        $region88: #{tpu_custom_call.1} parent=67 // pred_fallthru
          _
      $region68: #{tpu_custom_call.1} parent=5 // pred_fallthru
        _
      %p1686 = scmp.le.s32.totalorder 2, %s24
      // Predicated region
      $region89: #{tpu_custom_call.1} parent=5 // pred_check
        %p1687 = pneg %p1686
      $region90: #{tpu_custom_call.1} parent=5 // pred_check_branch
        %1689 = sbr.rel (%p1687) target = $region92
      $region91: #{tpu_custom_call.1} parent=5 // pred_region
        %s1690 = ssub.s32 %s24, 2
        // Predicated region
        $region93: #{tpu_custom_call.1} parent=91 // pred_check
          %p1691 = pneg %p331
        $region94: #{tpu_custom_call.1} parent=91 // pred_check_branch
          %1693 = sbr.rel (%p1691) target = $region96
        $region95: #{tpu_custom_call.1} parent=91 // pred_region
          %s1694 = sand.u32 %s316, 1
          %s1695 = scalar_lea.sflag [#allocation7], %s1694
          %s1696 = sand.u32 %s316, 1
          %s1697 = smul.addr %s1696, 8
          %s1698 = scalar_lea.vmem [#allocation12], %s1697
          %1699 = dma.done %s1695, 128
        $region96: #{tpu_custom_call.1} parent=91 // pred_fallthru
          _
      $region92: #{tpu_custom_call.1} parent=5 // pred_fallthru
        _
    $region6: #{tpu_custom_call.1} parent=1 // loop_footer
      %s28 = sadd.s32 1, %s24
    $region7: #{tpu_custom_call.1} parent=1 // loop_footer_branch
      %23 = sbr.rel target = $region3
    $region8: #{tpu_custom_call.1} parent=1 // loop_exit
      _
    %1700 = vsyncpa [#allocation7], 1
    %s1701 = scalar_lea.sflag [#allocation7], 1
    %1702 = vsyncpa %s1701, 1
    %1703 = vsyncpa [#allocation8], 1
    %s1704 = scalar_lea.sflag [#allocation8], 1
    %1705 = vsyncpa %s1704, 1
    %1706 = vsyncpa [#allocation10], 1

</llo_original>
